<compile_context>
chip_gen: v5e
topology: v5e:2x2
jax: 0.10.0
libtpu: 0.0.40
codegen_flags: <defaults>
</compile_context>

<pallas_src>
import functools

import jax
import jax.numpy as jnp
from jax import lax
from jax.experimental import pallas as pl
from jax.experimental.pallas import tpu as pltpu

P_DROP = 0.3
BN_EPS = 1e-5


def resblock_kernel(xb_ref, wt_ref, b_ref, gamma_ref, beta_ref, mask_ref,
                    xres_ref, o_ref):
    # ---- Linear: x @ W.T + b.  W.T ships pre-transposed as (F_in, TN) bf16,
    # x ships as a resident bf16 copy; f32 accumulation on the MXU. ----
    h = jnp.dot(xb_ref[...], wt_ref[...], preferred_element_type=jnp.float32)
    h = h + b_ref[...]

    # ---- ReLU ----
    h = jnp.maximum(h, 0.0)

    # ---- BatchNorm1d (training): per-feature batch mean / biased variance ----
    n = h.shape[0]
    mean = jnp.sum(h, axis=0, keepdims=True) * (1.0 / n)
    diff = h - mean
    var = jnp.sum(diff * diff, axis=0, keepdims=True) * (1.0 / n)
    hn = diff * lax.rsqrt(var + BN_EPS)
    # gamma/beta arrive pre-scaled by 1/(1-p): dropout's inverted scale is
    # folded into the affine, so dropout below is a pure mask multiply.
    hn = hn * gamma_ref[...] + beta_ref[...]

    # ---- Dropout(p=0.3): keep-mask in {0,1}, scale already folded in ----
    hd = hn * mask_ref[...].astype(jnp.float32)

    # ---- Residual add ----
    o_ref[...] = (hd + xres_ref[...]).astype(o_ref.dtype)


@functools.partial(jax.jit, static_argnames=("block_features",))
def resblock_forward(x, w, b, gamma, beta, keep_mask, *, block_features=None):
    """x: (N, F) f32; w: (F_out, F_in) like nn.Linear.weight; b/gamma/beta: (F,);
    keep_mask: (N, F) bool (True = keep)."""
    N, F = x.shape

    if block_features is None:
        block_features = next((c for c in (512, 256, 128) if F % c == 0), F)
    tn = block_features
    assert F % tn == 0, "feature dim must be divisible by the feature tile"
    grid = (F // tn,)

    # Wrapper-side layout plumbing / constant folding.
    scale = 1.0 / (1.0 - P_DROP)
    wt = w.T.astype(jnp.bfloat16)                      # (F_in, F_out), MXU-ready
    xb = x.astype(jnp.bfloat16)                        # matmul operand (resident)
    b2 = b.reshape(1, F).astype(jnp.float32)
    g2 = (gamma * scale).reshape(1, F).astype(jnp.float32)
    be2 = (beta * scale).reshape(1, F).astype(jnp.float32)
    mask = keep_mask.astype(jnp.bfloat16)              # {0, 1}

    # VMEM budget: resident bf16 x + double-buffered per-tile operands,
    # kept with headroom under v7x's 64 MiB physical VMEM.
    tile_bytes = 2 * (F * tn * 2 + N * tn * (2 + 4 + 4) + 3 * tn * 4)
    vmem_limit = int(2 * N * F * 2 + tile_bytes + (8 << 20))
    vmem_limit = max(16 << 20, min(vmem_limit, 48 << 20))

    cost = pl.CostEstimate(
        flops=2 * N * F * F,
        transcendentals=0,
        bytes_accessed=(xb.size * 2 + wt.size * 2 + x.size * 4
                        + mask.size * 2 + 3 * F * 4 + N * F * 4),
    )

    return pl.pallas_call(
        resblock_kernel,
        out_shape=jax.ShapeDtypeStruct((N, F), x.dtype),
        grid_spec=pltpu.PrefetchScalarGridSpec(
            num_scalar_prefetch=0,
            grid=grid,
            in_specs=[
                pl.BlockSpec((N, F), lambda j: (0, 0)),    # x (bf16, resident)
                pl.BlockSpec((F, tn), lambda j: (0, j)),   # W.T feature tile
                pl.BlockSpec((1, tn), lambda j: (0, j)),   # bias
                pl.BlockSpec((1, tn), lambda j: (0, j)),   # gamma * 1/(1-p)
                pl.BlockSpec((1, tn), lambda j: (0, j)),   # beta  * 1/(1-p)
                pl.BlockSpec((N, tn), lambda j: (0, j)),   # dropout keep-mask
                pl.BlockSpec((N, tn), lambda j: (0, j)),   # residual x (f32)
            ],
            out_specs=pl.BlockSpec((N, tn), lambda j: (0, j)),
        ),
        compiler_params=pltpu.CompilerParams(
            dimension_semantics=("parallel",),   # feature tiles are independent
            vmem_limit_bytes=vmem_limit,
        ),
        cost_estimate=cost,
    )(xb, wt, b2, g2, be2, mask, x)


if __name__ == "__main__":
    # Lane-dense demo shape: batch 128 (sublane-aligned), features 256
    # (multiple of 128); feature tile 128 -> grid of 2 to exercise tiling.
    N = 128
    F = 256

    key = jax.random.PRNGKey(0)
    kx, kw, kb, kg, kbe, kdrop = jax.random.split(key, 6)

    x = jax.random.normal(kx, (N, F), dtype=jnp.float32)

    # nn.Linear-like uniform init (weight is (out_features, in_features)).
    bound = 1.0 / jnp.sqrt(jnp.float32(F))
    w = jax.random.uniform(kw, (F, F), jnp.float32, -bound, bound)
    b = jax.random.uniform(kb, (F,), jnp.float32, -bound, bound)
    gamma = 1.0 + 0.1 * jax.random.normal(kg, (F,), jnp.float32)
    beta = 0.1 * jax.random.normal(kbe, (F,), jnp.float32)

    # Dropout keep-mask: P(keep) = 1 - p.
    keep_mask = jax.random.bernoulli(kdrop, p=1.0 - P_DROP, shape=(N, F))

    out = resblock_forward(x, w, b, gamma, beta, keep_mask, block_features=128)
    jax.block_until_ready(out)
    assert out.shape == (N, F) and out.dtype == jnp.float32
    print("KERNEL_OK")
</pallas_src>

<mosaic_0001>
module attributes {stable_mosaic.version = 11 : i64} {
  func.func @resblock_kernel(%arg0: i32, %arg1: memref<128x256xbf16, #tpu.memory_space<vmem>>, %arg2: memref<256x128xbf16, #tpu.memory_space<vmem>>, %arg3: memref<1x128xf32, #tpu.memory_space<vmem>>, %arg4: memref<1x128xf32, #tpu.memory_space<vmem>>, %arg5: memref<1x128xf32, #tpu.memory_space<vmem>>, %arg6: memref<128x128xbf16, #tpu.memory_space<vmem>>, %arg7: memref<128x128xf32, #tpu.memory_space<vmem>>, %arg8: memref<128x128xf32, #tpu.memory_space<vmem>>) attributes {dimension_semantics = [#tpu.dimension_semantics<parallel>], iteration_bounds = array<i64: 2>, scalar_prefetch = 0 : i64, scratch_operands = 0 : i64, tpu.core_type = #tpu.core_type<tc>, window_params = [{pipeline_mode = #tpu.pipeline_mode<synchronous>, transform_indices = @transform_0, window_bounds = array<i64: 128, 256>}, {transform_indices = @transform_1, window_bounds = array<i64: 256, 128>}, {transform_indices = @transform_2, window_bounds = array<i64: 1, 128>}, {transform_indices = @transform_3, window_bounds = array<i64: 1, 128>}, {transform_indices = @transform_4, window_bounds = array<i64: 1, 128>}, {transform_indices = @transform_5, window_bounds = array<i64: 128, 128>}, {transform_indices = @transform_6, window_bounds = array<i64: 128, 128>}, {transform_indices = @transform_7, window_bounds = array<i64: 128, 128>}]} {
    %c0 = arith.constant 0 : index
    %c0_0 = arith.constant 0 : index
    %0 = vector.load %arg1[%c0, %c0_0] : memref<128x256xbf16, #tpu.memory_space<vmem>>, vector<128x256xbf16>
    %c0_1 = arith.constant 0 : index
    %c0_2 = arith.constant 0 : index
    %1 = vector.load %arg2[%c0_1, %c0_2] : memref<256x128xbf16, #tpu.memory_space<vmem>>, vector<256x128xbf16>
    %cst = arith.constant dense<0.000000e+00> : vector<128x128xf32>
    %2 = tpu.matmul %0, %1, %cst {dimension_numbers = #tpu.dot_dimension_numbers<[1], [0], [0], [1], [0, 0, 1, 1], [], []>} : vector<128x256xbf16>, vector<256x128xbf16>, vector<128x128xf32> -> vector<128x128xf32>
    %c0_3 = arith.constant 0 : index
    %c0_4 = arith.constant 0 : index
    %3 = vector.load %arg3[%c0_3, %c0_4] : memref<1x128xf32, #tpu.memory_space<vmem>>, vector<1x128xf32>
    %4 = vector.broadcast %3 : vector<1x128xf32> to vector<128x128xf32>
    %5 = arith.addf %2, %4 : vector<128x128xf32>
    %cst_5 = arith.constant 0.000000e+00 : f32
    %6 = vector.broadcast %cst_5 : f32 to vector<128x128xf32>
    %7 = arith.maximumf %5, %6 : vector<128x128xf32>
    %cst_6 = arith.constant dense<0.000000e+00> : vector<128xf32>
    %8 = vector.multi_reduction <add>, %7, %cst_6 [0] : vector<128x128xf32> to vector<128xf32>
    %9 = vector.shape_cast %8 : vector<128xf32> to vector<1x128xf32>
    %cst_7 = arith.constant 7.812500e-03 : f32
    %10 = vector.broadcast %cst_7 : f32 to vector<1x128xf32>
    %11 = arith.mulf %9, %10 : vector<1x128xf32>
    %12 = vector.broadcast %11 : vector<1x128xf32> to vector<128x128xf32>
    %13 = arith.subf %7, %12 : vector<128x128xf32>
    %14 = arith.mulf %13, %13 : vector<128x128xf32>
    %cst_8 = arith.constant dense<0.000000e+00> : vector<128xf32>
    %15 = vector.multi_reduction <add>, %14, %cst_8 [0] : vector<128x128xf32> to vector<128xf32>
    %16 = vector.shape_cast %15 : vector<128xf32> to vector<1x128xf32>
    %cst_9 = arith.constant 7.812500e-03 : f32
    %17 = vector.broadcast %cst_9 : f32 to vector<1x128xf32>
    %18 = arith.mulf %16, %17 : vector<1x128xf32>
    %cst_10 = arith.constant 9.99999974E-6 : f32
    %19 = vector.broadcast %cst_10 : f32 to vector<1x128xf32>
    %20 = arith.addf %18, %19 : vector<1x128xf32>
    %21 = math.rsqrt %20 : vector<1x128xf32>
    %22 = vector.broadcast %21 : vector<1x128xf32> to vector<128x128xf32>
    %23 = arith.mulf %13, %22 : vector<128x128xf32>
    %c0_11 = arith.constant 0 : index
    %c0_12 = arith.constant 0 : index
    %24 = vector.load %arg4[%c0_11, %c0_12] : memref<1x128xf32, #tpu.memory_space<vmem>>, vector<1x128xf32>
    %25 = vector.broadcast %24 : vector<1x128xf32> to vector<128x128xf32>
    %26 = arith.mulf %23, %25 : vector<128x128xf32>
    %c0_13 = arith.constant 0 : index
    %c0_14 = arith.constant 0 : index
    %27 = vector.load %arg5[%c0_13, %c0_14] : memref<1x128xf32, #tpu.memory_space<vmem>>, vector<1x128xf32>
    %28 = vector.broadcast %27 : vector<1x128xf32> to vector<128x128xf32>
    %29 = arith.addf %26, %28 : vector<128x128xf32>
    %c0_15 = arith.constant 0 : index
    %c0_16 = arith.constant 0 : index
    %30 = vector.load %arg6[%c0_15, %c0_16] : memref<128x128xbf16, #tpu.memory_space<vmem>>, vector<128x128xbf16>
    %31 = arith.extf %30 : vector<128x128xbf16> to vector<128x128xf32>
    %32 = arith.mulf %29, %31 : vector<128x128xf32>
    %c0_17 = arith.constant 0 : index
    %c0_18 = arith.constant 0 : index
    %33 = vector.load %arg7[%c0_17, %c0_18] : memref<128x128xf32, #tpu.memory_space<vmem>>, vector<128x128xf32>
    %34 = arith.addf %32, %33 : vector<128x128xf32>
    %c0_19 = arith.constant 0 : index
    %c0_20 = arith.constant 0 : index
    %35 = vector.load %arg8[%c0_19, %c0_20] : memref<128x128xf32, #tpu.memory_space<vmem>>, vector<128x128xf32>
    tpu.vector_store %arg8[%c0_19, %c0_20], %34 {strides = array<i32>} : memref<128x128xf32, #tpu.memory_space<vmem>>, vector<128x128xf32>,
    return
  }
  func.func @transform_0(%arg0: i32) -> (i32, i32) {
    %c0_i32 = arith.constant 0 : i32
    %c0_i32_0 = arith.constant 0 : i32
    %c0_i32_1 = arith.constant 0 : i32
    return %c0_i32, %c0_i32_0 : i32, i32
  }
  func.func @transform_1(%arg0: i32) -> (i32, i32) {
    %c0_i32 = arith.constant 0 : i32
    %c0_i32_0 = arith.constant 0 : i32
    return %c0_i32, %arg0 : i32, i32
  }
  func.func @transform_2(%arg0: i32) -> (i32, i32) {
    %c0_i32 = arith.constant 0 : i32
    %c0_i32_0 = arith.constant 0 : i32
    return %c0_i32, %arg0 : i32, i32
  }
  func.func @transform_3(%arg0: i32) -> (i32, i32) {
    %c0_i32 = arith.constant 0 : i32
    %c0_i32_0 = arith.constant 0 : i32
    return %c0_i32, %arg0 : i32, i32
  }
  func.func @transform_4(%arg0: i32) -> (i32, i32) {
    %c0_i32 = arith.constant 0 : i32
    %c0_i32_0 = arith.constant 0 : i32
    return %c0_i32, %arg0 : i32, i32
  }
  func.func @transform_5(%arg0: i32) -> (i32, i32) {
    %c0_i32 = arith.constant 0 : i32
    %c0_i32_0 = arith.constant 0 : i32
    return %c0_i32, %arg0 : i32, i32
  }
  func.func @transform_6(%arg0: i32) -> (i32, i32) {
    %c0_i32 = arith.constant 0 : i32
    %c0_i32_0 = arith.constant 0 : i32
    return %c0_i32, %arg0 : i32, i32
  }
  func.func @transform_7(%arg0: i32) -> (i32, i32) {
    %c0_i32 = arith.constant 0 : i32
    %c0_i32_0 = arith.constant 0 : i32
    return %c0_i32, %arg0 : i32, i32
  }
}

</mosaic_0001>

<llo_original>
// kernel: resblock_forward.1
$region0: #{resblock_forward.1}
  #allocation0 [shape = 'u32[]', space=smem, size = 0x4, offset = 0x4, fixed_abs, tag = 'smem constant byte address 0x4 - core index']
  #allocation1 [shape = 'u32[72,128]{1,0:T(1,128)}', space=vmem, size = 0x9000, scoped, tag = 'internal scratch']
  %s0 = inlined_call_operand.vmem [shape: bf16[128,256], index: 0, kind: input, shape index: {}]
  %s1 = inlined_call_operand.vmem [shape: bf16[256,256], index: 1, kind: input, shape index: {}]
  %s2 = inlined_call_operand.vmem [shape: f32[1,256], index: 2, kind: input, shape index: {}]
  %s3 = inlined_call_operand.vmem [shape: f32[1,256], index: 3, kind: input, shape index: {}]
  %s4 = inlined_call_operand.vmem [shape: f32[1,256], index: 4, kind: input, shape index: {}]
  %s5 = inlined_call_operand.vmem [shape: bf16[128,256], index: 5, kind: input, shape index: {}]
  %s6 = inlined_call_operand.vmem [shape: f32[128,256], index: 6, kind: input, shape index: {}]
  %s7 = inlined_call_operand.hbm [shape: f32[128,256], index: 7, kind: output, shape index: {}]
  %s8 = sld [smem:[#allocation0]]
  $region181: #{resblock_forward.1} parent=0
    _
  %s10 = ssub.s32 1, %s8
  %s11 = scalar_select 0, %s10, %s8
  $region1: #{resblock_forward.1} parent=0
    #allocation2 [shape = 'u8[131072]{0}', space=vmem, size = 0x20000, scoped, tag = 'input window, operand 1']
    #allocation3 [shape = 'u8[65536]{0}', space=vmem, size = 0x10000, scoped, tag = 'input window, operand 5']
    #allocation4 [shape = 'u8[131072]{0}', space=vmem, size = 0x20000, scoped, tag = 'input window, operand 6']
    #allocation5 [shape = 'u8[131072]{0}', space=vmem, size = 0x20000, scoped, tag = 'output window, operand 0']
    #allocation6 [shape = 's32[2]{0}', space=sflag, size = 0x8, scoped, tag = 'scoped memory for resblock_forward.1']
    %12 = vsyncpa [#allocation6], 0
    %s13 = scalar_lea.sflag [#allocation6], 1
    %14 = vsyncpa %s13, 0
    loop: start=0, step=1, limit=4
    $region2: #{resblock_forward.1} parent=1 // loop_pre_header
      _
    $region3: #{resblock_forward.1} parent=1 // loop_header
      %s16 = sphi 0, %s20
      %p17 = scmp.ge.s32.totalorder %s16, 4
      %s24 = sphi 0, %s24
      %s26 = sphi 0, %s24
      %s27 = sphi 0, %s26
      %s41 = sphi 0, %s27
      %s47 = sphi 0, %s49
      %s50 = sphi 0, %s47
      %s51 = sphi 0, %s50
      %s67 = sphi 0, %s51
      %s73 = sphi 0, %s75
      %s76 = sphi 0, %s73
      %s77 = sphi 0, %s76
      %s93 = sphi 0, %s77
      %s99 = sphi 0, %s101
      %s102 = sphi 0, %s99
      %s103 = sphi 0, %s102
      %s119 = sphi 0, %s103
      %s125 = sphi 0, %s127
      %s128 = sphi 0, %s125
      %s129 = sphi 0, %s128
      %s145 = sphi 0, %s129
      %s151 = sphi 0, %s153
      %s154 = sphi 0, %s151
      %s155 = sphi 0, %s154
      %s171 = sphi 0, %s155
      %s177 = sphi 0, %s179
      %s180 = sphi 0, %s177
      %s181 = sphi 0, %s180
      %s197 = sphi 0, %s181
      %s203 = sphi 0, %s205
      %s206 = sphi 0, %s203
      %s207 = sphi 0, %s206
      %s223 = sphi 0, %s207
    $region4: #{resblock_forward.1} parent=1 // loop_header_branch
      %19 = sbr.rel (%p17) target = $region8
    $region5: #{resblock_forward.1} parent=1 // loop_body
      %s21 = ssub.s32 %s16, 1
      %s22 = ssub.s32 %s16, 2
      %s23 = sadd.s32 %s16, 1
      %s25 = sadd.s32 %s24, 1
      %p28 = scmp.eq.s32.totalorder %s16, 1
      %p29 = scmp.ne.s32.totalorder %s24, %s26
      %p30 = scmp.eq.s32.totalorder %s16, 0
      %p31 = por %p29, %p30
      %p32 = scmp.ne.s32.totalorder %s24, %s26
      %p33 = scmp.eq.s32.totalorder %s21, 1
      %p34 = por %p32, %p33
      %p35 = scmp.ne.s32.totalorder %s26, %s27
      %p36 = scmp.eq.s32.totalorder %s21, 0
      %p37 = por %p35, %p36
      %p38 = scmp.ne.s32.totalorder %s26, %s27
      %p39 = scmp.eq.s32.totalorder %s22, 1
      %p40 = por %p38, %p39
      %p42 = scmp.ne.s32.totalorder %s27, %s41
      %p43 = scmp.eq.s32.totalorder %s22, 0
      %p44 = por %p42, %p43
      %s45 = ssub.s32 %s16, %s23
      %p46 = scmp.eq.s32.totalorder %s45, 0
      %s48 = sadd.s32 %s47, 1
      %s49 = scalar_select %p46, %s47, %s48
      %p52 = pneg %p46
      %p53 = scmp.eq.s32.totalorder %s16, 1
      %p54 = por %p52, %p53
      %p55 = scmp.ne.s32.totalorder %s47, %s50
      %p56 = scmp.eq.s32.totalorder %s16, 0
      %p57 = por %p55, %p56
      %p58 = scmp.ne.s32.totalorder %s47, %s50
      %p59 = scmp.eq.s32.totalorder %s21, 1
      %p60 = por %p58, %p59
      %p61 = scmp.ne.s32.totalorder %s50, %s51
      %p62 = scmp.eq.s32.totalorder %s21, 0
      %p63 = por %p61, %p62
      %p64 = scmp.ne.s32.totalorder %s50, %s51
      %p65 = scmp.eq.s32.totalorder %s22, 1
      %p66 = por %p64, %p65
      %p68 = scmp.ne.s32.totalorder %s51, %s67
      %p69 = scmp.eq.s32.totalorder %s22, 0
      %p70 = por %p68, %p69
      %s71 = ssub.s32 %s16, %s23
      %p72 = scmp.eq.s32.totalorder %s71, 0
      %s74 = sadd.s32 %s73, 1
      %s75 = scalar_select %p72, %s73, %s74
      %p78 = pneg %p72
      %p79 = scmp.eq.s32.totalorder %s16, 1
      %p80 = por %p78, %p79
      %p81 = scmp.ne.s32.totalorder %s73, %s76
      %p82 = scmp.eq.s32.totalorder %s16, 0
      %p83 = por %p81, %p82
      %p84 = scmp.ne.s32.totalorder %s73, %s76
      %p85 = scmp.eq.s32.totalorder %s21, 1
      %p86 = por %p84, %p85
      %p87 = scmp.ne.s32.totalorder %s76, %s77
      %p88 = scmp.eq.s32.totalorder %s21, 0
      %p89 = por %p87, %p88
      %p90 = scmp.ne.s32.totalorder %s76, %s77
      %p91 = scmp.eq.s32.totalorder %s22, 1
      %p92 = por %p90, %p91
      %p94 = scmp.ne.s32.totalorder %s77, %s93
      %p95 = scmp.eq.s32.totalorder %s22, 0
      %p96 = por %p94, %p95
      %s97 = ssub.s32 %s16, %s23
      %p98 = scmp.eq.s32.totalorder %s97, 0
      %s100 = sadd.s32 %s99, 1
      %s101 = scalar_select %p98, %s99, %s100
      %p104 = pneg %p98
      %p105 = scmp.eq.s32.totalorder %s16, 1
      %p106 = por %p104, %p105
      %p107 = scmp.ne.s32.totalorder %s99, %s102
      %p108 = scmp.eq.s32.totalorder %s16, 0
      %p109 = por %p107, %p108
      %p110 = scmp.ne.s32.totalorder %s99, %s102
      %p111 = scmp.eq.s32.totalorder %s21, 1
      %p112 = por %p110, %p111
      %p113 = scmp.ne.s32.totalorder %s102, %s103
      %p114 = scmp.eq.s32.totalorder %s21, 0
      %p115 = por %p113, %p114
      %p116 = scmp.ne.s32.totalorder %s102, %s103
      %p117 = scmp.eq.s32.totalorder %s22, 1
      %p118 = por %p116, %p117
      %p120 = scmp.ne.s32.totalorder %s103, %s119
      %p121 = scmp.eq.s32.totalorder %s22, 0
      %p122 = por %p120, %p121
      %s123 = ssub.s32 %s16, %s23
      %p124 = scmp.eq.s32.totalorder %s123, 0
      %s126 = sadd.s32 %s125, 1
      %s127 = scalar_select %p124, %s125, %s126
      %p130 = pneg %p124
      %p131 = scmp.eq.s32.totalorder %s16, 1
      %p132 = por %p130, %p131
      %p133 = scmp.ne.s32.totalorder %s125, %s128
      %p134 = scmp.eq.s32.totalorder %s16, 0
      %p135 = por %p133, %p134
      %p136 = scmp.ne.s32.totalorder %s125, %s128
      %p137 = scmp.eq.s32.totalorder %s21, 1
      %p138 = por %p136, %p137
      %p139 = scmp.ne.s32.totalorder %s128, %s129
      %p140 = scmp.eq.s32.totalorder %s21, 0
      %p141 = por %p139, %p140
      %p142 = scmp.ne.s32.totalorder %s128, %s129
      %p143 = scmp.eq.s32.totalorder %s22, 1
      %p144 = por %p142, %p143
      %p146 = scmp.ne.s32.totalorder %s129, %s145
      %p147 = scmp.eq.s32.totalorder %s22, 0
      %p148 = por %p146, %p147
      %s149 = ssub.s32 %s16, %s23
      %p150 = scmp.eq.s32.totalorder %s149, 0
      %s152 = sadd.s32 %s151, 1
      %s153 = scalar_select %p150, %s151, %s152
      %p156 = pneg %p150
      %p157 = scmp.eq.s32.totalorder %s16, 1
      %p158 = por %p156, %p157
      %p159 = scmp.ne.s32.totalorder %s151, %s154
      %p160 = scmp.eq.s32.totalorder %s16, 0
      %p161 = por %p159, %p160
      %p162 = scmp.ne.s32.totalorder %s151, %s154
      %p163 = scmp.eq.s32.totalorder %s21, 1
      %p164 = por %p162, %p163
      %p165 = scmp.ne.s32.totalorder %s154, %s155
      %p166 = scmp.eq.s32.totalorder %s21, 0
      %p167 = por %p165, %p166
      %p168 = scmp.ne.s32.totalorder %s154, %s155
      %p169 = scmp.eq.s32.totalorder %s22, 1
      %p170 = por %p168, %p169
      %p172 = scmp.ne.s32.totalorder %s155, %s171
      %p173 = scmp.eq.s32.totalorder %s22, 0
      %p174 = por %p172, %p173
      %s175 = ssub.s32 %s16, %s23
      %p176 = scmp.eq.s32.totalorder %s175, 0
      %s178 = sadd.s32 %s177, 1
      %s179 = scalar_select %p176, %s177, %s178
      %p182 = pneg %p176
      %p183 = scmp.eq.s32.totalorder %s16, 1
      %p184 = por %p182, %p183
      %p185 = scmp.ne.s32.totalorder %s177, %s180
      %p186 = scmp.eq.s32.totalorder %s16, 0
      %p187 = por %p185, %p186
      %p188 = scmp.ne.s32.totalorder %s177, %s180
      %p189 = scmp.eq.s32.totalorder %s21, 1
      %p190 = por %p188, %p189
      %p191 = scmp.ne.s32.totalorder %s180, %s181
      %p192 = scmp.eq.s32.totalorder %s21, 0
      %p193 = por %p191, %p192
      %p194 = scmp.ne.s32.totalorder %s180, %s181
      %p195 = scmp.eq.s32.totalorder %s22, 1
      %p196 = por %p194, %p195
      %p198 = scmp.ne.s32.totalorder %s181, %s197
      %p199 = scmp.eq.s32.totalorder %s22, 0
      %p200 = por %p198, %p199
      %s201 = ssub.s32 %s16, %s23
      %p202 = scmp.eq.s32.totalorder %s201, 0
      %s204 = sadd.s32 %s203, 1
      %s205 = scalar_select %p202, %s203, %s204
      %p208 = pneg %p202
      %p209 = scmp.eq.s32.totalorder %s16, 1
      %p210 = por %p208, %p209
      %p211 = scmp.ne.s32.totalorder %s203, %s206
      %p212 = scmp.eq.s32.totalorder %s16, 0
      %p213 = por %p211, %p212
      %p214 = scmp.ne.s32.totalorder %s203, %s206
      %p215 = scmp.eq.s32.totalorder %s21, 1
      %p216 = por %p214, %p215
      %p217 = scmp.ne.s32.totalorder %s206, %s207
      %p218 = scmp.eq.s32.totalorder %s21, 0
      %p219 = por %p217, %p218
      %p220 = scmp.ne.s32.totalorder %s206, %s207
      %p221 = scmp.eq.s32.totalorder %s22, 1
      %p222 = por %p220, %p221
      %p224 = scmp.ne.s32.totalorder %s207, %s223
      %p225 = scmp.eq.s32.totalorder %s22, 0
      %p226 = por %p224, %p225
      %p227 = scmp.le.s32.totalorder 1, %s16
      %p228 = scmp.lt.s32.totalorder %s16, 3
      %p229 = pnand %p227, %p228
      %p230 = pneg %p229
      // Predicated region
      $region9: #{resblock_forward.1} parent=5 // pred_check
        _
      $region10: #{resblock_forward.1} parent=5 // pred_check_branch
        %232 = sbr.rel (%p229) target = $region12
      $region11: #{resblock_forward.1} parent=5 // pred_region
        %s233 = ssub.s32 %s16, 1
        // Predicated region
        $region13: #{resblock_forward.1} parent=11 // pred_check
          %p234 = pneg %p37
        $region14: #{resblock_forward.1} parent=11 // pred_check_branch
          %236 = sbr.rel (%p234) target = $region16
        $region15: #{resblock_forward.1} parent=11 // pred_region
          _
        $region16: #{resblock_forward.1} parent=11 // pred_fallthru
          _
      $region12: #{resblock_forward.1} parent=5 // pred_fallthru
        _
      %p237 = scmp.lt.s32.totalorder %s16, 2
      // Predicated region
      $region17: #{resblock_forward.1} parent=5 // pred_check
        %p238 = pneg %p237
      $region18: #{resblock_forward.1} parent=5 // pred_check_branch
        %240 = sbr.rel (%p238) target = $region20
      $region19: #{resblock_forward.1} parent=5 // pred_region
        // Predicated region
        $region21: #{resblock_forward.1} parent=19 // pred_check
          %p241 = pneg %p57
        $region22: #{resblock_forward.1} parent=19 // pred_check_branch
          %243 = sbr.rel (%p241) target = $region24
        $region23: #{resblock_forward.1} parent=19 // pred_region
          %s244 = sand.u32 %s47, 1
          %s245 = sand.u32 %s47, 1
          %s246 = smul.addr %s245, 128
          %s247 = scalar_lea.vmem [#allocation2], %s246
          %s248 = smul.addr %s16, 4
          %s249 = scalar_lea.vmem %s1, %s248
          // Predicated region
          $region25: #{resblock_forward.1} parent=23 // pred_check
            _
          $region26: #{resblock_forward.1} parent=23 // pred_check_branch
            %251 = sbr.rel (0) target = $region28
          $region27: #{resblock_forward.1} parent=23 // pred_region
            // Predicated region
            $region29: #{resblock_forward.1} parent=27 // pred_check
              _
            $region30: #{resblock_forward.1} parent=27 // pred_check_branch
              %253 = sbr.rel target = $region32
            $region31: #{resblock_forward.1} parent=27 // pred_region
              // Predicated region
              $region44: #{resblock_forward.1} parent=31 // pred_check
                _
              $region45: #{resblock_forward.1} parent=31 // pred_check_branch
                %331 = sbr.rel (0) target = $region47
              $region46: #{resblock_forward.1} parent=31 // pred_region
                loop: start=0, step=1, limit=1
                $region48: #{resblock_forward.1} parent=46 // loop_pre_header
                  _
                $region49: #{resblock_forward.1} parent=46 // loop_header
                  %s333 = sphi 0, %s337
                  %p334 = scmp.ge.s32.totalorder %s333, 1
                  %s338 = sphi %s249, %s249
                  %s339 = sphi %s247, %s247
                $region50: #{resblock_forward.1} parent=46 // loop_header_branch
                  %336 = sbr.rel (%p334) target = $region54
                $region51: #{resblock_forward.1} parent=46 // loop_body
                  _
                $region52: #{resblock_forward.1} parent=46 // loop_footer
                  %s337 = sadd.s32 1, %s333
                $region53: #{resblock_forward.1} parent=46 // loop_footer_branch
                  %332 = sbr.rel target = $region49
                $region54: #{resblock_forward.1} parent=46 // loop_exit
                  _
                %s341 = ssub.s32 16, 1
                loop: start=0, step=1, limit=1
                $region55: #{resblock_forward.1} parent=46 // loop_pre_header
                  _
                $region56: #{resblock_forward.1} parent=46 // loop_header
                  %s343 = sphi 0, %s347
                  %p344 = scmp.ge.s32.totalorder %s343, 1
                  %s348 = sphi %s249, %s249
                  %s349 = sphi %s247, %s247
                $region57: #{resblock_forward.1} parent=46 // loop_header_branch
                  %346 = sbr.rel (%p344) target = $region61
                $region58: #{resblock_forward.1} parent=46 // loop_body
                  %v350 = vld [vmem:[%s348] sm:%s341]
                  %351 = vst [vmem:[%s349] sm:%s341] %v350
                  %v352 = vld [vmem:[%s348 + $0x8] sm:%s341]
                  %353 = vst [vmem:[%s349 + $0x4] sm:%s341] %v352
                  %v354 = vld [vmem:[%s348 + $0x10] sm:%s341]
                  %355 = vst [vmem:[%s349 + $0x8] sm:%s341] %v354
                  %v356 = vld [vmem:[%s348 + $0x18] sm:%s341]
                  %357 = vst [vmem:[%s349 + $0xc] sm:%s341] %v356
                  %v358 = vld [vmem:[%s348 + $0x20] sm:%s341]
                  %359 = vst [vmem:[%s349 + $0x10] sm:%s341] %v358
                  %v360 = vld [vmem:[%s348 + $0x28] sm:%s341]
                  %361 = vst [vmem:[%s349 + $0x14] sm:%s341] %v360
                  %v362 = vld [vmem:[%s348 + $0x30] sm:%s341]
                  %363 = vst [vmem:[%s349 + $0x18] sm:%s341] %v362
                  %v364 = vld [vmem:[%s348 + $0x38] sm:%s341]
                  %365 = vst [vmem:[%s349 + $0x1c] sm:%s341] %v364
                  %v366 = vld [vmem:[%s348 + $0x40] sm:%s341]
                  %367 = vst [vmem:[%s349 + $0x20] sm:%s341] %v366
                  %v368 = vld [vmem:[%s348 + $0x48] sm:%s341]
                  %369 = vst [vmem:[%s349 + $0x24] sm:%s341] %v368
                  %v370 = vld [vmem:[%s348 + $0x50] sm:%s341]
                  %371 = vst [vmem:[%s349 + $0x28] sm:%s341] %v370
                  %v372 = vld [vmem:[%s348 + $0x58] sm:%s341]
                  %373 = vst [vmem:[%s349 + $0x2c] sm:%s341] %v372
                  %v374 = vld [vmem:[%s348 + $0x60] sm:%s341]
                  %375 = vst [vmem:[%s349 + $0x30] sm:%s341] %v374
                  %v376 = vld [vmem:[%s348 + $0x68] sm:%s341]
                  %377 = vst [vmem:[%s349 + $0x34] sm:%s341] %v376
                  %v378 = vld [vmem:[%s348 + $0x70] sm:%s341]
                  %379 = vst [vmem:[%s349 + $0x38] sm:%s341] %v378
                  %v380 = vld [vmem:[%s348 + $0x78] sm:%s341]
                  %381 = vst [vmem:[%s349 + $0x3c] sm:%s341] %v380
                  %v382 = vld [vmem:[%s348 + $0x80] sm:%s341]
                  %383 = vst [vmem:[%s349 + $0x40] sm:%s341] %v382
                  %v384 = vld [vmem:[%s348 + $0x88] sm:%s341]
                  %385 = vst [vmem:[%s349 + $0x44] sm:%s341] %v384
                  %v386 = vld [vmem:[%s348 + $0x90] sm:%s341]
                  %387 = vst [vmem:[%s349 + $0x48] sm:%s341] %v386
                  %v388 = vld [vmem:[%s348 + $0x98] sm:%s341]
                  %389 = vst [vmem:[%s349 + $0x4c] sm:%s341] %v388
                  %v390 = vld [vmem:[%s348 + $0xa0] sm:%s341]
                  %391 = vst [vmem:[%s349 + $0x50] sm:%s341] %v390
                  %v392 = vld [vmem:[%s348 + $0xa8] sm:%s341]
                  %393 = vst [vmem:[%s349 + $0x54] sm:%s341] %v392
                  %v394 = vld [vmem:[%s348 + $0xb0] sm:%s341]
                  %395 = vst [vmem:[%s349 + $0x58] sm:%s341] %v394
                  %v396 = vld [vmem:[%s348 + $0xb8] sm:%s341]
                  %397 = vst [vmem:[%s349 + $0x5c] sm:%s341] %v396
                  %v398 = vld [vmem:[%s348 + $0xc0] sm:%s341]
                  %399 = vst [vmem:[%s349 + $0x60] sm:%s341] %v398
                  %v400 = vld [vmem:[%s348 + $0xc8] sm:%s341]
                  %401 = vst [vmem:[%s349 + $0x64] sm:%s341] %v400
                  %v402 = vld [vmem:[%s348 + $0xd0] sm:%s341]
                  %403 = vst [vmem:[%s349 + $0x68] sm:%s341] %v402
                  %v404 = vld [vmem:[%s348 + $0xd8] sm:%s341]
                  %405 = vst [vmem:[%s349 + $0x6c] sm:%s341] %v404
                  %v406 = vld [vmem:[%s348 + $0xe0] sm:%s341]
                  %407 = vst [vmem:[%s349 + $0x70] sm:%s341] %v406
                  %v408 = vld [vmem:[%s348 + $0xe8] sm:%s341]
                  %409 = vst [vmem:[%s349 + $0x74] sm:%s341] %v408
                  %v410 = vld [vmem:[%s348 + $0xf0] sm:%s341]
                  %411 = vst [vmem:[%s349 + $0x78] sm:%s341] %v410
                  %v412 = vld [vmem:[%s348 + $0xf8] sm:%s341]
                  %413 = vst [vmem:[%s349 + $0x7c] sm:%s341] %v412
                $region59: #{resblock_forward.1} parent=46 // loop_footer
                  %s347 = sadd.s32 1, %s343
                $region60: #{resblock_forward.1} parent=46 // loop_footer_branch
                  %342 = sbr.rel target = $region56
                $region61: #{resblock_forward.1} parent=46 // loop_exit
                  _
              $region47: #{resblock_forward.1} parent=31 // pred_fallthru
                _
            $region32: #{resblock_forward.1} parent=27 // pred_fallthru
              _
            // Predicated region
            $region33: #{resblock_forward.1} parent=27 // pred_check
              _
            $region34: #{resblock_forward.1} parent=27 // pred_check_branch
              %255 = sbr.rel (0) target = $region36
            $region35: #{resblock_forward.1} parent=27 // pred_region
              %s257 = ssub.s32 16, 1
              loop: start=0, step=1, limit=1
              $region37: #{resblock_forward.1} parent=35 // loop_pre_header
                _
              $region38: #{resblock_forward.1} parent=35 // loop_header
                %s259 = sphi 0, %s263
                %p260 = scmp.ge.s32.totalorder %s259, 1
                %s264 = sphi %s249, %s249
                %s265 = sphi %s247, %s247
              $region39: #{resblock_forward.1} parent=35 // loop_header_branch
                %262 = sbr.rel (%p260) target = $region43
              $region40: #{resblock_forward.1} parent=35 // loop_body
                %v266 = vld [vmem:[%s264] sm:%s257]
                %267 = vst [vmem:[%s265] sm:%s257] %v266
                %v268 = vld [vmem:[%s264 + $0x8] sm:%s257]
                %269 = vst [vmem:[%s265 + $0x4] sm:%s257] %v268
                %v270 = vld [vmem:[%s264 + $0x10] sm:%s257]
                %271 = vst [vmem:[%s265 + $0x8] sm:%s257] %v270
                %v272 = vld [vmem:[%s264 + $0x18] sm:%s257]
                %273 = vst [vmem:[%s265 + $0xc] sm:%s257] %v272
                %v274 = vld [vmem:[%s264 + $0x20] sm:%s257]
                %275 = vst [vmem:[%s265 + $0x10] sm:%s257] %v274
                %v276 = vld [vmem:[%s264 + $0x28] sm:%s257]
                %277 = vst [vmem:[%s265 + $0x14] sm:%s257] %v276
                %v278 = vld [vmem:[%s264 + $0x30] sm:%s257]
                %279 = vst [vmem:[%s265 + $0x18] sm:%s257] %v278
                %v280 = vld [vmem:[%s264 + $0x38] sm:%s257]
                %281 = vst [vmem:[%s265 + $0x1c] sm:%s257] %v280
                %v282 = vld [vmem:[%s264 + $0x40] sm:%s257]
                %283 = vst [vmem:[%s265 + $0x20] sm:%s257] %v282
                %v284 = vld [vmem:[%s264 + $0x48] sm:%s257]
                %285 = vst [vmem:[%s265 + $0x24] sm:%s257] %v284
                %v286 = vld [vmem:[%s264 + $0x50] sm:%s257]
                %287 = vst [vmem:[%s265 + $0x28] sm:%s257] %v286
                %v288 = vld [vmem:[%s264 + $0x58] sm:%s257]
                %289 = vst [vmem:[%s265 + $0x2c] sm:%s257] %v288
                %v290 = vld [vmem:[%s264 + $0x60] sm:%s257]
                %291 = vst [vmem:[%s265 + $0x30] sm:%s257] %v290
                %v292 = vld [vmem:[%s264 + $0x68] sm:%s257]
                %293 = vst [vmem:[%s265 + $0x34] sm:%s257] %v292
                %v294 = vld [vmem:[%s264 + $0x70] sm:%s257]
                %295 = vst [vmem:[%s265 + $0x38] sm:%s257] %v294
                %v296 = vld [vmem:[%s264 + $0x78] sm:%s257]
                %297 = vst [vmem:[%s265 + $0x3c] sm:%s257] %v296
                %v298 = vld [vmem:[%s264 + $0x80] sm:%s257]
                %299 = vst [vmem:[%s265 + $0x40] sm:%s257] %v298
                %v300 = vld [vmem:[%s264 + $0x88] sm:%s257]
                %301 = vst [vmem:[%s265 + $0x44] sm:%s257] %v300
                %v302 = vld [vmem:[%s264 + $0x90] sm:%s257]
                %303 = vst [vmem:[%s265 + $0x48] sm:%s257] %v302
                %v304 = vld [vmem:[%s264 + $0x98] sm:%s257]
                %305 = vst [vmem:[%s265 + $0x4c] sm:%s257] %v304
                %v306 = vld [vmem:[%s264 + $0xa0] sm:%s257]
                %307 = vst [vmem:[%s265 + $0x50] sm:%s257] %v306
                %v308 = vld [vmem:[%s264 + $0xa8] sm:%s257]
                %309 = vst [vmem:[%s265 + $0x54] sm:%s257] %v308
                %v310 = vld [vmem:[%s264 + $0xb0] sm:%s257]
                %311 = vst [vmem:[%s265 + $0x58] sm:%s257] %v310
                %v312 = vld [vmem:[%s264 + $0xb8] sm:%s257]
                %313 = vst [vmem:[%s265 + $0x5c] sm:%s257] %v312
                %v314 = vld [vmem:[%s264 + $0xc0] sm:%s257]
                %315 = vst [vmem:[%s265 + $0x60] sm:%s257] %v314
                %v316 = vld [vmem:[%s264 + $0xc8] sm:%s257]
                %317 = vst [vmem:[%s265 + $0x64] sm:%s257] %v316
                %v318 = vld [vmem:[%s264 + $0xd0] sm:%s257]
                %319 = vst [vmem:[%s265 + $0x68] sm:%s257] %v318
                %v320 = vld [vmem:[%s264 + $0xd8] sm:%s257]
                %321 = vst [vmem:[%s265 + $0x6c] sm:%s257] %v320
                %v322 = vld [vmem:[%s264 + $0xe0] sm:%s257]
                %323 = vst [vmem:[%s265 + $0x70] sm:%s257] %v322
                %v324 = vld [vmem:[%s264 + $0xe8] sm:%s257]
                %325 = vst [vmem:[%s265 + $0x74] sm:%s257] %v324
                %v326 = vld [vmem:[%s264 + $0xf0] sm:%s257]
                %327 = vst [vmem:[%s265 + $0x78] sm:%s257] %v326
                %v328 = vld [vmem:[%s264 + $0xf8] sm:%s257]
                %329 = vst [vmem:[%s265 + $0x7c] sm:%s257] %v328
              $region41: #{resblock_forward.1} parent=35 // loop_footer
                %s263 = sadd.s32 1, %s259
              $region42: #{resblock_forward.1} parent=35 // loop_footer_branch
                %258 = sbr.rel target = $region38
              $region43: #{resblock_forward.1} parent=35 // loop_exit
                _
            $region36: #{resblock_forward.1} parent=27 // pred_fallthru
              _
          $region28: #{resblock_forward.1} parent=23 // pred_fallthru
            _
          %414 = vnop
        $region24: #{resblock_forward.1} parent=19 // pred_fallthru
          _
        // Predicated region
        $region62: #{resblock_forward.1} parent=19 // pred_check
          %p415 = pneg %p83
        $region63: #{resblock_forward.1} parent=19 // pred_check_branch
          %417 = sbr.rel (%p415) target = $region65
        $region64: #{resblock_forward.1} parent=19 // pred_region
          %p418 = scmp.lt.s32.totalorder %s16, 1
          %s419 = scalar_select %p418, %s16, 1
          %s420 = scalar_lea.vmem %s2, %s419
        $region65: #{resblock_forward.1} parent=19 // pred_fallthru
          _
        // Predicated region
        $region66: #{resblock_forward.1} parent=19 // pred_check
          %p421 = pneg %p109
        $region67: #{resblock_forward.1} parent=19 // pred_check_branch
          %423 = sbr.rel (%p421) target = $region69
        $region68: #{resblock_forward.1} parent=19 // pred_region
          %p424 = scmp.lt.s32.totalorder %s16, 1
          %s425 = scalar_select %p424, %s16, 1
          %s426 = scalar_lea.vmem %s3, %s425
        $region69: #{resblock_forward.1} parent=19 // pred_fallthru
          _
        // Predicated region
        $region70: #{resblock_forward.1} parent=19 // pred_check
          %p427 = pneg %p135
        $region71: #{resblock_forward.1} parent=19 // pred_check_branch
          %429 = sbr.rel (%p427) target = $region73
        $region72: #{resblock_forward.1} parent=19 // pred_region
          %p430 = scmp.lt.s32.totalorder %s16, 1
          %s431 = scalar_select %p430, %s16, 1
          %s432 = scalar_lea.vmem %s4, %s431
        $region73: #{resblock_forward.1} parent=19 // pred_fallthru
          _
        // Predicated region
        $region74: #{resblock_forward.1} parent=19 // pred_check
          %p433 = pneg %p161
        $region75: #{resblock_forward.1} parent=19 // pred_check_branch
          %435 = sbr.rel (%p433) target = $region77
        $region76: #{resblock_forward.1} parent=19 // pred_region
          %s436 = sand.u32 %s151, 1
          %s437 = sand.u32 %s151, 1
          %s438 = smul.addr %s437, 64
          %s439 = scalar_lea.vmem [#allocation3], %s438
          %s440 = smul.addr %s16, 4
          %s441 = scalar_lea.vmem %s5, %s440
          // Predicated region
          $region78: #{resblock_forward.1} parent=76 // pred_check
            _
          $region79: #{resblock_forward.1} parent=76 // pred_check_branch
            %443 = sbr.rel (0) target = $region81
          $region80: #{resblock_forward.1} parent=76 // pred_region
            // Predicated region
            $region82: #{resblock_forward.1} parent=80 // pred_check
              _
            $region83: #{resblock_forward.1} parent=80 // pred_check_branch
              %445 = sbr.rel target = $region85
            $region84: #{resblock_forward.1} parent=80 // pred_region
              // Predicated region
              $region97: #{resblock_forward.1} parent=84 // pred_check
                _
              $region98: #{resblock_forward.1} parent=84 // pred_check_branch
                %491 = sbr.rel (0) target = $region100
              $region99: #{resblock_forward.1} parent=84 // pred_region
                loop: start=0, step=1, limit=1
                $region101: #{resblock_forward.1} parent=99 // loop_pre_header
                  _
                $region102: #{resblock_forward.1} parent=99 // loop_header
                  %s493 = sphi 0, %s497
                  %p494 = scmp.ge.s32.totalorder %s493, 1
                  %s498 = sphi %s441, %s441
                  %s499 = sphi %s439, %s439
                $region103: #{resblock_forward.1} parent=99 // loop_header_branch
                  %496 = sbr.rel (%p494) target = $region107
                $region104: #{resblock_forward.1} parent=99 // loop_body
                  _
                $region105: #{resblock_forward.1} parent=99 // loop_footer
                  %s497 = sadd.s32 1, %s493
                $region106: #{resblock_forward.1} parent=99 // loop_footer_branch
                  %492 = sbr.rel target = $region102
                $region107: #{resblock_forward.1} parent=99 // loop_exit
                  _
                %s501 = ssub.s32 16, 1
                loop: start=0, step=1, limit=1
                $region108: #{resblock_forward.1} parent=99 // loop_pre_header
                  _
                $region109: #{resblock_forward.1} parent=99 // loop_header
                  %s503 = sphi 0, %s507
                  %p504 = scmp.ge.s32.totalorder %s503, 1
                  %s508 = sphi %s441, %s441
                  %s509 = sphi %s439, %s439
                $region110: #{resblock_forward.1} parent=99 // loop_header_branch
                  %506 = sbr.rel (%p504) target = $region114
                $region111: #{resblock_forward.1} parent=99 // loop_body
                  %v510 = vld [vmem:[%s508] sm:%s501]
                  %511 = vst [vmem:[%s509] sm:%s501] %v510
                  %v512 = vld [vmem:[%s508 + $0x8] sm:%s501]
                  %513 = vst [vmem:[%s509 + $0x4] sm:%s501] %v512
                  %v514 = vld [vmem:[%s508 + $0x10] sm:%s501]
                  %515 = vst [vmem:[%s509 + $0x8] sm:%s501] %v514
                  %v516 = vld [vmem:[%s508 + $0x18] sm:%s501]
                  %517 = vst [vmem:[%s509 + $0xc] sm:%s501] %v516
                  %v518 = vld [vmem:[%s508 + $0x20] sm:%s501]
                  %519 = vst [vmem:[%s509 + $0x10] sm:%s501] %v518
                  %v520 = vld [vmem:[%s508 + $0x28] sm:%s501]
                  %521 = vst [vmem:[%s509 + $0x14] sm:%s501] %v520
                  %v522 = vld [vmem:[%s508 + $0x30] sm:%s501]
                  %523 = vst [vmem:[%s509 + $0x18] sm:%s501] %v522
                  %v524 = vld [vmem:[%s508 + $0x38] sm:%s501]
                  %525 = vst [vmem:[%s509 + $0x1c] sm:%s501] %v524
                  %v526 = vld [vmem:[%s508 + $0x40] sm:%s501]
                  %527 = vst [vmem:[%s509 + $0x20] sm:%s501] %v526
                  %v528 = vld [vmem:[%s508 + $0x48] sm:%s501]
                  %529 = vst [vmem:[%s509 + $0x24] sm:%s501] %v528
                  %v530 = vld [vmem:[%s508 + $0x50] sm:%s501]
                  %531 = vst [vmem:[%s509 + $0x28] sm:%s501] %v530
                  %v532 = vld [vmem:[%s508 + $0x58] sm:%s501]
                  %533 = vst [vmem:[%s509 + $0x2c] sm:%s501] %v532
                  %v534 = vld [vmem:[%s508 + $0x60] sm:%s501]
                  %535 = vst [vmem:[%s509 + $0x30] sm:%s501] %v534
                  %v536 = vld [vmem:[%s508 + $0x68] sm:%s501]
                  %537 = vst [vmem:[%s509 + $0x34] sm:%s501] %v536
                  %v538 = vld [vmem:[%s508 + $0x70] sm:%s501]
                  %539 = vst [vmem:[%s509 + $0x38] sm:%s501] %v538
                  %v540 = vld [vmem:[%s508 + $0x78] sm:%s501]
                  %541 = vst [vmem:[%s509 + $0x3c] sm:%s501] %v540
                $region112: #{resblock_forward.1} parent=99 // loop_footer
                  %s507 = sadd.s32 1, %s503
                $region113: #{resblock_forward.1} parent=99 // loop_footer_branch
                  %502 = sbr.rel target = $region109
                $region114: #{resblock_forward.1} parent=99 // loop_exit
                  _
              $region100: #{resblock_forward.1} parent=84 // pred_fallthru
                _
            $region85: #{resblock_forward.1} parent=80 // pred_fallthru
              _
            // Predicated region
            $region86: #{resblock_forward.1} parent=80 // pred_check
              _
            $region87: #{resblock_forward.1} parent=80 // pred_check_branch
              %447 = sbr.rel (0) target = $region89
            $region88: #{resblock_forward.1} parent=80 // pred_region
              %s449 = ssub.s32 16, 1
              loop: start=0, step=1, limit=1
              $region90: #{resblock_forward.1} parent=88 // loop_pre_header
                _
              $region91: #{resblock_forward.1} parent=88 // loop_header
                %s451 = sphi 0, %s455
                %p452 = scmp.ge.s32.totalorder %s451, 1
                %s456 = sphi %s441, %s441
                %s457 = sphi %s439, %s439
              $region92: #{resblock_forward.1} parent=88 // loop_header_branch
                %454 = sbr.rel (%p452) target = $region96
              $region93: #{resblock_forward.1} parent=88 // loop_body
                %v458 = vld [vmem:[%s456] sm:%s449]
                %459 = vst [vmem:[%s457] sm:%s449] %v458
                %v460 = vld [vmem:[%s456 + $0x8] sm:%s449]
                %461 = vst [vmem:[%s457 + $0x4] sm:%s449] %v460
                %v462 = vld [vmem:[%s456 + $0x10] sm:%s449]
                %463 = vst [vmem:[%s457 + $0x8] sm:%s449] %v462
                %v464 = vld [vmem:[%s456 + $0x18] sm:%s449]
                %465 = vst [vmem:[%s457 + $0xc] sm:%s449] %v464
                %v466 = vld [vmem:[%s456 + $0x20] sm:%s449]
                %467 = vst [vmem:[%s457 + $0x10] sm:%s449] %v466
                %v468 = vld [vmem:[%s456 + $0x28] sm:%s449]
                %469 = vst [vmem:[%s457 + $0x14] sm:%s449] %v468
                %v470 = vld [vmem:[%s456 + $0x30] sm:%s449]
                %471 = vst [vmem:[%s457 + $0x18] sm:%s449] %v470
                %v472 = vld [vmem:[%s456 + $0x38] sm:%s449]
                %473 = vst [vmem:[%s457 + $0x1c] sm:%s449] %v472
                %v474 = vld [vmem:[%s456 + $0x40] sm:%s449]
                %475 = vst [vmem:[%s457 + $0x20] sm:%s449] %v474
                %v476 = vld [vmem:[%s456 + $0x48] sm:%s449]
                %477 = vst [vmem:[%s457 + $0x24] sm:%s449] %v476
                %v478 = vld [vmem:[%s456 + $0x50] sm:%s449]
                %479 = vst [vmem:[%s457 + $0x28] sm:%s449] %v478
                %v480 = vld [vmem:[%s456 + $0x58] sm:%s449]
                %481 = vst [vmem:[%s457 + $0x2c] sm:%s449] %v480
                %v482 = vld [vmem:[%s456 + $0x60] sm:%s449]
                %483 = vst [vmem:[%s457 + $0x30] sm:%s449] %v482
                %v484 = vld [vmem:[%s456 + $0x68] sm:%s449]
                %485 = vst [vmem:[%s457 + $0x34] sm:%s449] %v484
                %v486 = vld [vmem:[%s456 + $0x70] sm:%s449]
                %487 = vst [vmem:[%s457 + $0x38] sm:%s449] %v486
                %v488 = vld [vmem:[%s456 + $0x78] sm:%s449]
                %489 = vst [vmem:[%s457 + $0x3c] sm:%s449] %v488
              $region94: #{resblock_forward.1} parent=88 // loop_footer
                %s455 = sadd.s32 1, %s451
              $region95: #{resblock_forward.1} parent=88 // loop_footer_branch
                %450 = sbr.rel target = $region91
              $region96: #{resblock_forward.1} parent=88 // loop_exit
                _
            $region89: #{resblock_forward.1} parent=80 // pred_fallthru
              _
          $region81: #{resblock_forward.1} parent=76 // pred_fallthru
            _
          %542 = vnop
        $region77: #{resblock_forward.1} parent=19 // pred_fallthru
          _
        // Predicated region
        $region115: #{resblock_forward.1} parent=19 // pred_check
          %p543 = pneg %p187
        $region116: #{resblock_forward.1} parent=19 // pred_check_branch
          %545 = sbr.rel (%p543) target = $region118
        $region117: #{resblock_forward.1} parent=19 // pred_region
          %s546 = sand.u32 %s177, 1
          %s547 = sand.u32 %s177, 1
          %s548 = smul.addr %s547, 128
          %s549 = scalar_lea.vmem [#allocation4], %s548
          %s550 = smul.addr %s16, 8
          %s551 = scalar_lea.vmem %s6, %s550
          // Predicated region
          $region119: #{resblock_forward.1} parent=117 // pred_check
            _
          $region120: #{resblock_forward.1} parent=117 // pred_check_branch
            %553 = sbr.rel (0) target = $region122
          $region121: #{resblock_forward.1} parent=117 // pred_region
            // Predicated region
            $region123: #{resblock_forward.1} parent=121 // pred_check
              _
            $region124: #{resblock_forward.1} parent=121 // pred_check_branch
              %555 = sbr.rel (0) target = $region126
            $region125: #{resblock_forward.1} parent=121 // pred_region
              // Predicated region
              $region138: #{resblock_forward.1} parent=125 // pred_check
                _
              $region139: #{resblock_forward.1} parent=125 // pred_check_branch
                %601 = sbr.rel (0) target = $region141
              $region140: #{resblock_forward.1} parent=125 // pred_region
                loop: start=0, step=1, limit=1
                $region142: #{resblock_forward.1} parent=140 // loop_pre_header
                  _
                $region143: #{resblock_forward.1} parent=140 // loop_header
                  %s603 = sphi 0, %s607
                  %p604 = scmp.ge.s32.totalorder %s603, 1
                  %s608 = sphi %s551, %s551
                  %s609 = sphi %s549, %s549
                $region144: #{resblock_forward.1} parent=140 // loop_header_branch
                  %606 = sbr.rel (%p604) target = $region148
                $region145: #{resblock_forward.1} parent=140 // loop_body
                  %v610 = vld [vmem:[%s608] sm:$0xff]
                  %611 = vst [vmem:[%s609] sm:$0xff] %v610
                  %v612 = vld [vmem:[%s608 + $0x10] sm:$0xff]
                  %613 = vst [vmem:[%s609 + $0x8] sm:$0xff] %v612
                  %v614 = vld [vmem:[%s608 + $0x20] sm:$0xff]
                  %615 = vst [vmem:[%s609 + $0x10] sm:$0xff] %v614
                  %v616 = vld [vmem:[%s608 + $0x30] sm:$0xff]
                  %617 = vst [vmem:[%s609 + $0x18] sm:$0xff] %v616
                  %v618 = vld [vmem:[%s608 + $0x40] sm:$0xff]
                  %619 = vst [vmem:[%s609 + $0x20] sm:$0xff] %v618
                  %v620 = vld [vmem:[%s608 + $0x50] sm:$0xff]
                  %621 = vst [vmem:[%s609 + $0x28] sm:$0xff] %v620
                  %v622 = vld [vmem:[%s608 + $0x60] sm:$0xff]
                  %623 = vst [vmem:[%s609 + $0x30] sm:$0xff] %v622
                  %v624 = vld [vmem:[%s608 + $0x70] sm:$0xff]
                  %625 = vst [vmem:[%s609 + $0x38] sm:$0xff] %v624
                  %v626 = vld [vmem:[%s608 + $0x80] sm:$0xff]
                  %627 = vst [vmem:[%s609 + $0x40] sm:$0xff] %v626
                  %v628 = vld [vmem:[%s608 + $0x90] sm:$0xff]
                  %629 = vst [vmem:[%s609 + $0x48] sm:$0xff] %v628
                  %v630 = vld [vmem:[%s608 + $0xa0] sm:$0xff]
                  %631 = vst [vmem:[%s609 + $0x50] sm:$0xff] %v630
                  %v632 = vld [vmem:[%s608 + $0xb0] sm:$0xff]
                  %633 = vst [vmem:[%s609 + $0x58] sm:$0xff] %v632
                  %v634 = vld [vmem:[%s608 + $0xc0] sm:$0xff]
                  %635 = vst [vmem:[%s609 + $0x60] sm:$0xff] %v634
                  %v636 = vld [vmem:[%s608 + $0xd0] sm:$0xff]
                  %637 = vst [vmem:[%s609 + $0x68] sm:$0xff] %v636
                  %v638 = vld [vmem:[%s608 + $0xe0] sm:$0xff]
                  %639 = vst [vmem:[%s609 + $0x70] sm:$0xff] %v638
                  %v640 = vld [vmem:[%s608 + $0xf0] sm:$0xff]
                  %641 = vst [vmem:[%s609 + $0x78] sm:$0xff] %v640
                $region146: #{resblock_forward.1} parent=140 // loop_footer
                  %s607 = sadd.s32 1, %s603
                $region147: #{resblock_forward.1} parent=140 // loop_footer_branch
                  %602 = sbr.rel target = $region143
                $region148: #{resblock_forward.1} parent=140 // loop_exit
                  _
              $region141: #{resblock_forward.1} parent=125 // pred_fallthru
                _
              // Predicated region
              $region149: #{resblock_forward.1} parent=125 // pred_check
                _
              $region150: #{resblock_forward.1} parent=125 // pred_check_branch
                %643 = sbr.rel target = $region152
              $region151: #{resblock_forward.1} parent=125 // pred_region
                _
              $region152: #{resblock_forward.1} parent=125 // pred_fallthru
                _
            $region126: #{resblock_forward.1} parent=121 // pred_fallthru
              _
            // Predicated region
            $region127: #{resblock_forward.1} parent=121 // pred_check
              _
            $region128: #{resblock_forward.1} parent=121 // pred_check_branch
              %557 = sbr.rel target = $region130
            $region129: #{resblock_forward.1} parent=121 // pred_region
              %s559 = ssub.s32 256, 1
              loop: start=0, step=1, limit=1
              $region131: #{resblock_forward.1} parent=129 // loop_pre_header
                _
              $region132: #{resblock_forward.1} parent=129 // loop_header
                %s561 = sphi 0, %s565
                %p562 = scmp.ge.s32.totalorder %s561, 1
                %s566 = sphi %s551, %s551
                %s567 = sphi %s549, %s549
              $region133: #{resblock_forward.1} parent=129 // loop_header_branch
                %564 = sbr.rel (%p562) target = $region137
              $region134: #{resblock_forward.1} parent=129 // loop_body
                %v568 = vld [vmem:[%s566] sm:%s559]
                %569 = vst [vmem:[%s567] sm:%s559] %v568
                %v570 = vld [vmem:[%s566 + $0x10] sm:%s559]
                %571 = vst [vmem:[%s567 + $0x8] sm:%s559] %v570
                %v572 = vld [vmem:[%s566 + $0x20] sm:%s559]
                %573 = vst [vmem:[%s567 + $0x10] sm:%s559] %v572
                %v574 = vld [vmem:[%s566 + $0x30] sm:%s559]
                %575 = vst [vmem:[%s567 + $0x18] sm:%s559] %v574
                %v576 = vld [vmem:[%s566 + $0x40] sm:%s559]
                %577 = vst [vmem:[%s567 + $0x20] sm:%s559] %v576
                %v578 = vld [vmem:[%s566 + $0x50] sm:%s559]
                %579 = vst [vmem:[%s567 + $0x28] sm:%s559] %v578
                %v580 = vld [vmem:[%s566 + $0x60] sm:%s559]
                %581 = vst [vmem:[%s567 + $0x30] sm:%s559] %v580
                %v582 = vld [vmem:[%s566 + $0x70] sm:%s559]
                %583 = vst [vmem:[%s567 + $0x38] sm:%s559] %v582
                %v584 = vld [vmem:[%s566 + $0x80] sm:%s559]
                %585 = vst [vmem:[%s567 + $0x40] sm:%s559] %v584
                %v586 = vld [vmem:[%s566 + $0x90] sm:%s559]
                %587 = vst [vmem:[%s567 + $0x48] sm:%s559] %v586
                %v588 = vld [vmem:[%s566 + $0xa0] sm:%s559]
                %589 = vst [vmem:[%s567 + $0x50] sm:%s559] %v588
                %v590 = vld [vmem:[%s566 + $0xb0] sm:%s559]
                %591 = vst [vmem:[%s567 + $0x58] sm:%s559] %v590
                %v592 = vld [vmem:[%s566 + $0xc0] sm:%s559]
                %593 = vst [vmem:[%s567 + $0x60] sm:%s559] %v592
                %v594 = vld [vmem:[%s566 + $0xd0] sm:%s559]
                %595 = vst [vmem:[%s567 + $0x68] sm:%s559] %v594
                %v596 = vld [vmem:[%s566 + $0xe0] sm:%s559]
                %597 = vst [vmem:[%s567 + $0x70] sm:%s559] %v596
                %v598 = vld [vmem:[%s566 + $0xf0] sm:%s559]
                %599 = vst [vmem:[%s567 + $0x78] sm:%s559] %v598
              $region135: #{resblock_forward.1} parent=129 // loop_footer
                %s565 = sadd.s32 1, %s561
              $region136: #{resblock_forward.1} parent=129 // loop_footer_branch
                %560 = sbr.rel target = $region132
              $region137: #{resblock_forward.1} parent=129 // loop_exit
                _
            $region130: #{resblock_forward.1} parent=121 // pred_fallthru
              _
          $region122: #{resblock_forward.1} parent=117 // pred_fallthru
            _
          %644 = vnop
        $region118: #{resblock_forward.1} parent=19 // pred_fallthru
          _
      $region20: #{resblock_forward.1} parent=5 // pred_fallthru
        _
      %p645 = scmp.le.s32.totalorder 1, %s16
      %p646 = scmp.lt.s32.totalorder %s16, 3
      %p647 = pnand %p645, %p646
      %p648 = pneg %p647
      // Predicated region
      $region153: #{resblock_forward.1} parent=5 // pred_check
        _
      $region154: #{resblock_forward.1} parent=5 // pred_check_branch
        %650 = sbr.rel (%p647) target = $region156
      $region155: #{resblock_forward.1} parent=5 // pred_region
        %s651 = ssub.s32 %s16, 1
        %s652 = sand.u32 %s50, 1
        %s653 = sand.u32 %s50, 1
        %s654 = smul.addr %s653, 128
        %s655 = scalar_lea.vmem [#allocation2], %s654
        // Predicated region
        $region157: #{resblock_forward.1} parent=155 // pred_check
          %p656 = pneg %p63
        $region158: #{resblock_forward.1} parent=155 // pred_check_branch
          %658 = sbr.rel (%p656) target = $region160
        $region159: #{resblock_forward.1} parent=155 // pred_region
          _
        $region160: #{resblock_forward.1} parent=155 // pred_fallthru
          _
        %s659 = sand.u32 %s154, 1
        %s660 = sand.u32 %s154, 1
        %s661 = smul.addr %s660, 64
        %s662 = scalar_lea.vmem [#allocation3], %s661
        // Predicated region
        $region161: #{resblock_forward.1} parent=155 // pred_check
          %p663 = pneg %p167
        $region162: #{resblock_forward.1} parent=155 // pred_check_branch
          %665 = sbr.rel (%p663) target = $region164
        $region163: #{resblock_forward.1} parent=155 // pred_region
          _
        $region164: #{resblock_forward.1} parent=155 // pred_fallthru
          _
        %s666 = sand.u32 %s180, 1
        %s667 = sand.u32 %s180, 1
        %s668 = smul.addr %s667, 128
        %s669 = scalar_lea.vmem [#allocation4], %s668
        // Predicated region
        $region165: #{resblock_forward.1} parent=155 // pred_check
          %p670 = pneg %p193
        $region166: #{resblock_forward.1} parent=155 // pred_check_branch
          %672 = sbr.rel (%p670) target = $region168
        $region167: #{resblock_forward.1} parent=155 // pred_region
          _
        $region168: #{resblock_forward.1} parent=155 // pred_fallthru
          _
        %p673 = pneg %p37
        %p674 = pneg %p34
        %s675 = sand.u32 %s50, 1
        %s676 = sand.u32 %s50, 1
        %s677 = smul.addr %s676, 128
        %s678 = scalar_lea.vmem [#allocation2], %s677
        %p679 = pneg %p63
        %p680 = pneg %p60
        %p681 = scmp.lt.s32.totalorder %s21, 1
        %s682 = scalar_select %p681, %s21, 1
        %s683 = scalar_lea.vmem %s2, %s682
        %p684 = pneg %p89
        %p685 = pneg %p86
        %p686 = scmp.lt.s32.totalorder %s21, 1
        %s687 = scalar_select %p686, %s21, 1
        %s688 = scalar_lea.vmem %s3, %s687
        %p689 = pneg %p115
        %p690 = pneg %p112
        %p691 = scmp.lt.s32.totalorder %s21, 1
        %s692 = scalar_select %p691, %s21, 1
        %s693 = scalar_lea.vmem %s4, %s692
        %p694 = pneg %p141
        %p695 = pneg %p138
        %s696 = sand.u32 %s154, 1
        %s697 = sand.u32 %s154, 1
        %s698 = smul.addr %s697, 64
        %s699 = scalar_lea.vmem [#allocation3], %s698
        %p700 = pneg %p167
        %p701 = pneg %p164
        %s702 = sand.u32 %s180, 1
        %s703 = sand.u32 %s180, 1
        %s704 = smul.addr %s703, 128
        %s705 = scalar_lea.vmem [#allocation4], %s704
        %p706 = pneg %p193
        %p707 = pneg %p190
        %p708 = pneg %p219
        %p709 = pneg %p216
        %s710 = sand.u32 %s206, 1
        %s711 = scalar_lea.sflag [#allocation6], %s710
        %s712 = sand.u32 %s206, 1
        %s713 = smul.addr %s712, 128
        %s714 = scalar_lea.vmem [#allocation5], %s713
        %p715 = scmp.lt.s32.totalorder %s21, 1
        %s716 = scalar_select %p715, %s21, 1
        %s717 = scalar_lea.vmem %s2, %s716
        %p718 = scmp.lt.s32.totalorder %s21, 1
        %s719 = scalar_select %p718, %s21, 1
        %s720 = scalar_lea.vmem %s3, %s719
        %p721 = scmp.lt.s32.totalorder %s21, 1
        %s722 = scalar_select %p721, %s21, 1
        %s723 = scalar_lea.vmem %s4, %s722
        %v724 = vld [vmem:[%s0] sm:$0xff]
        %v725 = vld [vmem:[%s0 + $0x8] sm:$0xff]
        %v726 = vld [vmem:[%s0 + $0x10] sm:$0xff]
        %v727 = vld [vmem:[%s0 + $0x18] sm:$0xff]
        %v728 = vld [vmem:[%s0 + $0x20] sm:$0xff]
        %v729 = vld [vmem:[%s0 + $0x28] sm:$0xff]
        %v730 = vld [vmem:[%s0 + $0x30] sm:$0xff]
        %v731 = vld [vmem:[%s0 + $0x38] sm:$0xff]
        %v732 = vld [vmem:[%s0 + $0x40] sm:$0xff]
        %v733 = vld [vmem:[%s0 + $0x48] sm:$0xff]
        %v734 = vld [vmem:[%s0 + $0x50] sm:$0xff]
        %v735 = vld [vmem:[%s0 + $0x58] sm:$0xff]
        %v736 = vld [vmem:[%s0 + $0x60] sm:$0xff]
        %v737 = vld [vmem:[%s0 + $0x68] sm:$0xff]
        %v738 = vld [vmem:[%s0 + $0x70] sm:$0xff]
        %v739 = vld [vmem:[%s0 + $0x78] sm:$0xff]
        %v740 = vld [vmem:[%s655] sm:$0xf]
        %v741 = vld [vmem:[%s655 + $0x4] sm:$0xf]
        %v742 = vld [vmem:[%s655 + $0x8] sm:$0xf]
        %v743 = vld [vmem:[%s655 + $0xc] sm:$0xf]
        %v744 = vld [vmem:[%s655 + $0x10] sm:$0xf]
        %v745 = vld [vmem:[%s655 + $0x14] sm:$0xf]
        %v746 = vld [vmem:[%s655 + $0x18] sm:$0xf]
        %v747 = vld [vmem:[%s655 + $0x1c] sm:$0xf]
        %v748 = vld [vmem:[%s655 + $0x20] sm:$0xf]
        %v749 = vld [vmem:[%s655 + $0x24] sm:$0xf]
        %v750 = vld [vmem:[%s655 + $0x28] sm:$0xf]
        %v751 = vld [vmem:[%s655 + $0x2c] sm:$0xf]
        %v752 = vld [vmem:[%s655 + $0x30] sm:$0xf]
        %v753 = vld [vmem:[%s655 + $0x34] sm:$0xf]
        %v754 = vld [vmem:[%s655 + $0x38] sm:$0xf]
        %v755 = vld [vmem:[%s655 + $0x3c] sm:$0xf]
        %v756 = vld [vmem:[%s655 + $0x40] sm:$0xf]
        %v757 = vld [vmem:[%s655 + $0x44] sm:$0xf]
        %v758 = vld [vmem:[%s655 + $0x48] sm:$0xf]
        %v759 = vld [vmem:[%s655 + $0x4c] sm:$0xf]
        %v760 = vld [vmem:[%s655 + $0x50] sm:$0xf]
        %v761 = vld [vmem:[%s655 + $0x54] sm:$0xf]
        %v762 = vld [vmem:[%s655 + $0x58] sm:$0xf]
        %v763 = vld [vmem:[%s655 + $0x5c] sm:$0xf]
        %v764 = vld [vmem:[%s655 + $0x60] sm:$0xf]
        %v765 = vld [vmem:[%s655 + $0x64] sm:$0xf]
        %v766 = vld [vmem:[%s655 + $0x68] sm:$0xf]
        %v767 = vld [vmem:[%s655 + $0x6c] sm:$0xf]
        %v768 = vld [vmem:[%s655 + $0x70] sm:$0xf]
        %v769 = vld [vmem:[%s655 + $0x74] sm:$0xf]
        %v770 = vld [vmem:[%s655 + $0x78] sm:$0xf]
        %v771 = vld [vmem:[%s655 + $0x7c] sm:$0xf]
        %v772 = vld [vmem:[%s717] sm:$0x1]
        %v774 = vperm.slane %v772, 0
        %v792 = vunpack.c.l.b16 %v724
        %v793 = vunpack.c.h.b16 %v724
        %v794 = vunpack.c.l.b16 %v725
        %v795 = vunpack.c.h.b16 %v725
        %v796 = vunpack.c.l.b16 %v726
        %v797 = vunpack.c.h.b16 %v726
        %v798 = vunpack.c.l.b16 %v727
        %v799 = vunpack.c.h.b16 %v727
        %v800 = vunpack.c.l.b16 %v728
        %v801 = vunpack.c.h.b16 %v728
        %v802 = vunpack.c.l.b16 %v729
        %v803 = vunpack.c.h.b16 %v729
        %v804 = vunpack.c.l.b16 %v730
        %v805 = vunpack.c.h.b16 %v730
        %v806 = vunpack.c.l.b16 %v731
        %v807 = vunpack.c.h.b16 %v731
        %v808 = vunpack.c.l.b16 %v732
        %v809 = vunpack.c.h.b16 %v732
        %v810 = vunpack.c.l.b16 %v733
        %v811 = vunpack.c.h.b16 %v733
        %v812 = vunpack.c.l.b16 %v734
        %v813 = vunpack.c.h.b16 %v734
        %v814 = vunpack.c.l.b16 %v735
        %v815 = vunpack.c.h.b16 %v735
        %v816 = vunpack.c.l.b16 %v736
        %v817 = vunpack.c.h.b16 %v736
        %v818 = vunpack.c.l.b16 %v737
        %v819 = vunpack.c.h.b16 %v737
        %v820 = vunpack.c.l.b16 %v738
        %v821 = vunpack.c.h.b16 %v738
        %v822 = vunpack.c.l.b16 %v739
        %v823 = vunpack.c.h.b16 %v739
        %v824 = vpack.c.b16 %v794, %v792
        %v825 = vpack.c.b16 %v795, %v793
        %v826 = vpack.c.b16 %v798, %v796
        %v827 = vpack.c.b16 %v799, %v797
        %v828 = vpack.c.b16 %v802, %v800
        %v829 = vpack.c.b16 %v803, %v801
        %v830 = vpack.c.b16 %v806, %v804
        %v831 = vpack.c.b16 %v807, %v805
        %v832 = vpack.c.b16 %v810, %v808
        %v833 = vpack.c.b16 %v811, %v809
        %v834 = vpack.c.b16 %v814, %v812
        %v835 = vpack.c.b16 %v815, %v813
        %v836 = vpack.c.b16 %v818, %v816
        %v837 = vpack.c.b16 %v819, %v817
        %v838 = vpack.c.b16 %v822, %v820
        %v839 = vpack.c.b16 %v823, %v821
        %v888 = vunpack.c.l.b16 %v740
        %v889 = vunpack.c.l.b16 %v741
        %v890 = vunpack.c.l.b16 %v742
        %v891 = vunpack.c.l.b16 %v743
        %v892 = vunpack.c.l.b16 %v744
        %v893 = vunpack.c.l.b16 %v745
        %v894 = vunpack.c.l.b16 %v746
        %v895 = vunpack.c.l.b16 %v747
        %v896 = vunpack.c.l.b16 %v748
        %v897 = vunpack.c.l.b16 %v749
        %v898 = vunpack.c.l.b16 %v750
        %v899 = vunpack.c.l.b16 %v751
        %v900 = vunpack.c.l.b16 %v752
        %v901 = vunpack.c.l.b16 %v753
        %v902 = vunpack.c.l.b16 %v754
        %v903 = vunpack.c.l.b16 %v755
        %v904 = vunpack.c.l.b16 %v756
        %v905 = vunpack.c.l.b16 %v757
        %v906 = vunpack.c.l.b16 %v758
        %v907 = vunpack.c.l.b16 %v759
        %v908 = vunpack.c.l.b16 %v760
        %v909 = vunpack.c.l.b16 %v761
        %v910 = vunpack.c.l.b16 %v762
        %v911 = vunpack.c.l.b16 %v763
        %v912 = vunpack.c.l.b16 %v764
        %v913 = vunpack.c.l.b16 %v765
        %v914 = vunpack.c.l.b16 %v766
        %v915 = vunpack.c.l.b16 %v767
        %v916 = vunpack.c.l.b16 %v768
        %v917 = vunpack.c.l.b16 %v769
        %v918 = vunpack.c.l.b16 %v770
        %v919 = vunpack.c.l.b16 %v771
        %v920 = vpack.c.b16 %v889, %v888
        %v921 = vpack.c.b16 %v891, %v890
        %v922 = vpack.c.b16 %v893, %v892
        %v923 = vpack.c.b16 %v895, %v894
        %v924 = vpack.c.b16 %v897, %v896
        %v925 = vpack.c.b16 %v899, %v898
        %v926 = vpack.c.b16 %v901, %v900
        %v927 = vpack.c.b16 %v903, %v902
        %v928 = vpack.c.b16 %v905, %v904
        %v929 = vpack.c.b16 %v907, %v906
        %v930 = vpack.c.b16 %v909, %v908
        %v931 = vpack.c.b16 %v911, %v910
        %v932 = vpack.c.b16 %v913, %v912
        %v933 = vpack.c.b16 %v915, %v914
        %v934 = vpack.c.b16 %v917, %v916
        %v935 = vpack.c.b16 %v919, %v918
        %952 = vmatpush.bf16.msra.mxu0 %v927
        %953 = vmatpush.bf16.msra.mxu0 %v926
        %954 = vmatpush.bf16.msra.mxu0 %v925
        %955 = vmatpush.bf16.msra.mxu0 %v924
        %956 = vmatpush.bf16.msra.mxu0 %v923
        %957 = vmatpush.bf16.msra.mxu0 %v922
        %958 = vmatpush.bf16.msra.mxu0 %v921
        %959 = vmatpush.bf16.msra.mxu0 %v920
        %960 = vmatmul.bf16.gmra.mxu0 %v824
        %v961 = vpop.f32.mrf.mxu0
        %v962 = vadd.f32 %v774, %v961
        %v963 = vpop.f32.mrf.mxu0
        %v964 = vadd.f32 %v774, %v963
        %965 = vmatmul.bf16.gmra.mxu0 %v826
        %v966 = vpop.f32.mrf.mxu0
        %v967 = vadd.f32 %v774, %v966
        %v968 = vpop.f32.mrf.mxu0
        %v969 = vadd.f32 %v774, %v968
        %970 = vmatmul.bf16.gmra.mxu0 %v828
        %v971 = vpop.f32.mrf.mxu0
        %v972 = vadd.f32 %v774, %v971
        %v973 = vpop.f32.mrf.mxu0
        %v974 = vadd.f32 %v774, %v973
        %975 = vmatmul.bf16.gmra.mxu0 %v830
        %v976 = vpop.f32.mrf.mxu0
        %v977 = vadd.f32 %v774, %v976
        %v978 = vpop.f32.mrf.mxu0
        %v979 = vadd.f32 %v774, %v978
        %980 = vmatmul.bf16.gmra.mxu0 %v832
        %v981 = vpop.f32.mrf.mxu0
        %v982 = vadd.f32 %v774, %v981
        %v983 = vpop.f32.mrf.mxu0
        %v984 = vadd.f32 %v774, %v983
        %985 = vmatmul.bf16.gmra.mxu0 %v834
        %v986 = vpop.f32.mrf.mxu0
        %v987 = vadd.f32 %v774, %v986
        %v988 = vpop.f32.mrf.mxu0
        %v989 = vadd.f32 %v774, %v988
        %990 = vmatmul.bf16.gmra.mxu0 %v836
        %v991 = vpop.f32.mrf.mxu0
        %v992 = vadd.f32 %v774, %v991
        %v993 = vpop.f32.mrf.mxu0
        %v994 = vadd.f32 %v774, %v993
        %995 = vmatmul.bf16.gmra.mxu0 %v838
        %v996 = vpop.f32.mrf.mxu0
        %v997 = vadd.f32 %v774, %v996
        %v998 = vpop.f32.mrf.mxu0
        %v999 = vadd.f32 %v774, %v998
        %1000 = vdwg.mxu0
        %1001 = vmatpush.bf16.msra.mxu0 %v935
        %1002 = vmatpush.bf16.msra.mxu0 %v934
        %1003 = vmatpush.bf16.msra.mxu0 %v933
        %1004 = vmatpush.bf16.msra.mxu0 %v932
        %1005 = vmatpush.bf16.msra.mxu0 %v931
        %1006 = vmatpush.bf16.msra.mxu0 %v930
        %1007 = vmatpush.bf16.msra.mxu0 %v929
        %1008 = vmatpush.bf16.msra.mxu0 %v928
        %1009 = vmatmul.bf16.gmra.mxu0 %v825
        %v1010 = vpop.f32.mrf.mxu0
        %v1011 = vadd.f32 %v962, %v1010
        %v1012 = vpop.f32.mrf.mxu0
        %v1013 = vadd.f32 %v964, %v1012
        %1014 = vmatmul.bf16.gmra.mxu0 %v827
        %v1015 = vpop.f32.mrf.mxu0
        %v1016 = vadd.f32 %v967, %v1015
        %v1017 = vpop.f32.mrf.mxu0
        %v1018 = vadd.f32 %v969, %v1017
        %1019 = vmatmul.bf16.gmra.mxu0 %v829
        %v1020 = vpop.f32.mrf.mxu0
        %v1021 = vadd.f32 %v972, %v1020
        %v1022 = vpop.f32.mrf.mxu0
        %v1023 = vadd.f32 %v974, %v1022
        %1024 = vmatmul.bf16.gmra.mxu0 %v831
        %v1025 = vpop.f32.mrf.mxu0
        %v1026 = vadd.f32 %v977, %v1025
        %v1027 = vpop.f32.mrf.mxu0
        %v1028 = vadd.f32 %v979, %v1027
        %1029 = vmatmul.bf16.gmra.mxu0 %v833
        %v1030 = vpop.f32.mrf.mxu0
        %v1031 = vadd.f32 %v982, %v1030
        %v1032 = vpop.f32.mrf.mxu0
        %v1033 = vadd.f32 %v984, %v1032
        %1034 = vmatmul.bf16.gmra.mxu0 %v835
        %v1035 = vpop.f32.mrf.mxu0
        %v1036 = vadd.f32 %v987, %v1035
        %v1037 = vpop.f32.mrf.mxu0
        %v1038 = vadd.f32 %v989, %v1037
        %1039 = vmatmul.bf16.gmra.mxu0 %v837
        %v1040 = vpop.f32.mrf.mxu0
        %v1041 = vadd.f32 %v992, %v1040
        %v1042 = vpop.f32.mrf.mxu0
        %v1043 = vadd.f32 %v994, %v1042
        %1044 = vmatmul.bf16.gmra.mxu0 %v839
        %v1045 = vpop.f32.mrf.mxu0
        %v1046 = vadd.f32 %v997, %v1045
        %v1047 = vpop.f32.mrf.mxu0
        %v1048 = vadd.f32 %v999, %v1047
        %1049 = vdwg.mxu0
        %v1050 = vmax.f32 %v1011, 0.0
        %v1051 = vmax.f32 %v1013, 0.0
        %v1052 = vmax.f32 %v1016, 0.0
        %v1053 = vmax.f32 %v1018, 0.0
        %v1054 = vmax.f32 %v1021, 0.0
        %v1055 = vmax.f32 %v1023, 0.0
        %v1056 = vmax.f32 %v1026, 0.0
        %v1057 = vmax.f32 %v1028, 0.0
        %v1058 = vmax.f32 %v1031, 0.0
        %v1059 = vmax.f32 %v1033, 0.0
        %v1060 = vmax.f32 %v1036, 0.0
        %v1061 = vmax.f32 %v1038, 0.0
        %v1062 = vmax.f32 %v1041, 0.0
        %v1063 = vmax.f32 %v1043, 0.0
        %v1064 = vmax.f32 %v1046, 0.0
        %v1065 = vmax.f32 %v1048, 0.0
        %v1066 = vadd.f32 %v1050, %v1051
        %v1067 = vadd.f32 %v1066, %v1052
        %v1068 = vadd.f32 %v1067, %v1053
        %v1069 = vadd.f32 %v1068, %v1054
        %v1070 = vadd.f32 %v1069, %v1055
        %v1071 = vadd.f32 %v1070, %v1056
        %v1072 = vadd.f32 %v1071, %v1057
        %v1073 = vadd.f32 %v1072, %v1058
        %v1074 = vadd.f32 %v1073, %v1059
        %v1075 = vadd.f32 %v1074, %v1060
        %v1076 = vadd.f32 %v1075, %v1061
        %v1077 = vadd.f32 %v1076, %v1062
        %v1078 = vadd.f32 %v1077, %v1063
        %v1079 = vadd.f32 %v1078, %v1064
        %v1080 = vadd.f32 %v1079, %v1065
        %v1081 = vrot.slane %v1080, 4
        %v1082 = vadd.f32 %v1080, %v1081
        %v1083 = vrot.slane %v1082, 2
        %v1084 = vadd.f32 %v1082, %v1083
        %v1085 = vrot.slane %v1084, 1
        %v1086 = vadd.f32 %v1084, %v1085
        %v1087 = vmul.f32 %v1086, 0.0078125
        %v1088 = vsub.f32 %v1050, %v1087
        %v1089 = vsub.f32 %v1051, %v1087
        %v1090 = vsub.f32 %v1052, %v1087
        %v1091 = vsub.f32 %v1053, %v1087
        %v1092 = vsub.f32 %v1054, %v1087
        %v1093 = vsub.f32 %v1055, %v1087
        %v1094 = vsub.f32 %v1056, %v1087
        %v1095 = vsub.f32 %v1057, %v1087
        %v1096 = vsub.f32 %v1058, %v1087
        %v1097 = vsub.f32 %v1059, %v1087
        %v1098 = vsub.f32 %v1060, %v1087
        %v1099 = vsub.f32 %v1061, %v1087
        %v1100 = vsub.f32 %v1062, %v1087
        %v1101 = vsub.f32 %v1063, %v1087
        %v1102 = vsub.f32 %v1064, %v1087
        %v1103 = vsub.f32 %v1065, %v1087
        %v1104 = vmul.f32 %v1088, %v1088
        %v1105 = vmul.f32 %v1089, %v1089
        %v1106 = vmul.f32 %v1090, %v1090
        %v1107 = vmul.f32 %v1091, %v1091
        %v1108 = vmul.f32 %v1092, %v1092
        %v1109 = vmul.f32 %v1093, %v1093
        %v1110 = vmul.f32 %v1094, %v1094
        %v1111 = vmul.f32 %v1095, %v1095
        %v1112 = vmul.f32 %v1096, %v1096
        %v1113 = vmul.f32 %v1097, %v1097
        %v1114 = vmul.f32 %v1098, %v1098
        %v1115 = vmul.f32 %v1099, %v1099
        %v1116 = vmul.f32 %v1100, %v1100
        %v1117 = vmul.f32 %v1101, %v1101
        %v1118 = vmul.f32 %v1102, %v1102
        %v1119 = vmul.f32 %v1103, %v1103
        %v1120 = vadd.f32 %v1104, %v1105
        %v1121 = vadd.f32 %v1120, %v1106
        %v1122 = vadd.f32 %v1121, %v1107
        %v1123 = vadd.f32 %v1122, %v1108
        %v1124 = vadd.f32 %v1123, %v1109
        %v1125 = vadd.f32 %v1124, %v1110
        %v1126 = vadd.f32 %v1125, %v1111
        %v1127 = vadd.f32 %v1126, %v1112
        %v1128 = vadd.f32 %v1127, %v1113
        %v1129 = vadd.f32 %v1128, %v1114
        %v1130 = vadd.f32 %v1129, %v1115
        %v1131 = vadd.f32 %v1130, %v1116
        %v1132 = vadd.f32 %v1131, %v1117
        %v1133 = vadd.f32 %v1132, %v1118
        %v1134 = vadd.f32 %v1133, %v1119
        %v1135 = vrot.slane %v1134, 4
        %v1136 = vadd.f32 %v1134, %v1135
        %v1137 = vrot.slane %v1136, 2
        %v1138 = vadd.f32 %v1136, %v1137
        %v1139 = vrot.slane %v1138, 1
        %v1140 = vadd.f32 %v1138, %v1139
        %v1141 = vmul.f32 %v1140, 0.0078125
        %v1142 = vadd.f32 %v1141, 1e-05
        %v1143 = vrsqrt.pop %v1142
        %v1144 = vmul.f32 %v1143, %v1142
        %v1145 = vmul.f32 %v1144, %v1143
        %v1146 = vmul.f32 0.5, %v1145
        %v1147 = vsub.f32 1.5, %v1146
        %v1148 = vmul.f32 %v1143, %v1147
        %vm1149 = vweird.f32 %v1142
        %vm1150 = vweird.f32 %v1143
        %vm1151 = vmor %vm1149, %vm1150
        %v1152 = vsel %vm1151, %v1143, %v1148
        %v1153 = vmul.f32 %v1088, %v1152
        %v1154 = vmul.f32 %v1089, %v1152
        %v1155 = vmul.f32 %v1090, %v1152
        %v1156 = vmul.f32 %v1091, %v1152
        %v1157 = vmul.f32 %v1092, %v1152
        %v1158 = vmul.f32 %v1093, %v1152
        %v1159 = vmul.f32 %v1094, %v1152
        %v1160 = vmul.f32 %v1095, %v1152
        %v1161 = vmul.f32 %v1096, %v1152
        %v1162 = vmul.f32 %v1097, %v1152
        %v1163 = vmul.f32 %v1098, %v1152
        %v1164 = vmul.f32 %v1099, %v1152
        %v1165 = vmul.f32 %v1100, %v1152
        %v1166 = vmul.f32 %v1101, %v1152
        %v1167 = vmul.f32 %v1102, %v1152
        %v1168 = vmul.f32 %v1103, %v1152
        %v1169 = vld [vmem:[%s720] sm:$0x1]
        %v1171 = vperm.slane %v1169, 0
        %v1173 = vmul.f32 %v1153, %v1171
        %v1174 = vmul.f32 %v1154, %v1171
        %v1175 = vmul.f32 %v1155, %v1171
        %v1176 = vmul.f32 %v1156, %v1171
        %v1177 = vmul.f32 %v1157, %v1171
        %v1178 = vmul.f32 %v1158, %v1171
        %v1179 = vmul.f32 %v1159, %v1171
        %v1180 = vmul.f32 %v1160, %v1171
        %v1181 = vmul.f32 %v1161, %v1171
        %v1182 = vmul.f32 %v1162, %v1171
        %v1183 = vmul.f32 %v1163, %v1171
        %v1184 = vmul.f32 %v1164, %v1171
        %v1185 = vmul.f32 %v1165, %v1171
        %v1186 = vmul.f32 %v1166, %v1171
        %v1187 = vmul.f32 %v1167, %v1171
        %v1188 = vmul.f32 %v1168, %v1171
        %v1189 = vld [vmem:[%s723] sm:$0x1]
        %v1191 = vperm.slane %v1189, 0
        %v1193 = vadd.f32 %v1173, %v1191
        %v1194 = vadd.f32 %v1174, %v1191
        %v1195 = vadd.f32 %v1175, %v1191
        %v1196 = vadd.f32 %v1176, %v1191
        %v1197 = vadd.f32 %v1177, %v1191
        %v1198 = vadd.f32 %v1178, %v1191
        %v1199 = vadd.f32 %v1179, %v1191
        %v1200 = vadd.f32 %v1180, %v1191
        %v1201 = vadd.f32 %v1181, %v1191
        %v1202 = vadd.f32 %v1182, %v1191
        %v1203 = vadd.f32 %v1183, %v1191
        %v1204 = vadd.f32 %v1184, %v1191
        %v1205 = vadd.f32 %v1185, %v1191
        %v1206 = vadd.f32 %v1186, %v1191
        %v1207 = vadd.f32 %v1187, %v1191
        %v1208 = vadd.f32 %v1188, %v1191
        %v1209 = vld [vmem:[%s662] sm:$0xf]
        %v1210 = vld [vmem:[%s662 + $0x4] sm:$0xf]
        %v1211 = vld [vmem:[%s662 + $0x8] sm:$0xf]
        %v1212 = vld [vmem:[%s662 + $0xc] sm:$0xf]
        %v1213 = vld [vmem:[%s662 + $0x10] sm:$0xf]
        %v1214 = vld [vmem:[%s662 + $0x14] sm:$0xf]
        %v1215 = vld [vmem:[%s662 + $0x18] sm:$0xf]
        %v1216 = vld [vmem:[%s662 + $0x1c] sm:$0xf]
        %v1217 = vld [vmem:[%s662 + $0x20] sm:$0xf]
        %v1218 = vld [vmem:[%s662 + $0x24] sm:$0xf]
        %v1219 = vld [vmem:[%s662 + $0x28] sm:$0xf]
        %v1220 = vld [vmem:[%s662 + $0x2c] sm:$0xf]
        %v1221 = vld [vmem:[%s662 + $0x30] sm:$0xf]
        %v1222 = vld [vmem:[%s662 + $0x34] sm:$0xf]
        %v1223 = vld [vmem:[%s662 + $0x38] sm:$0xf]
        %v1224 = vld [vmem:[%s662 + $0x3c] sm:$0xf]
        %v1225 = vunpack.c.l.bf16 %v1209
        %v1226 = vunpack.c.l.bf16 %v1210
        %v1227 = vunpack.c.l.bf16 %v1211
        %v1228 = vunpack.c.l.bf16 %v1212
        %v1229 = vunpack.c.l.bf16 %v1213
        %v1230 = vunpack.c.l.bf16 %v1214
        %v1231 = vunpack.c.l.bf16 %v1215
        %v1232 = vunpack.c.l.bf16 %v1216
        %v1233 = vunpack.c.l.bf16 %v1217
        %v1234 = vunpack.c.l.bf16 %v1218
        %v1235 = vunpack.c.l.bf16 %v1219
        %v1236 = vunpack.c.l.bf16 %v1220
        %v1237 = vunpack.c.l.bf16 %v1221
        %v1238 = vunpack.c.l.bf16 %v1222
        %v1239 = vunpack.c.l.bf16 %v1223
        %v1240 = vunpack.c.l.bf16 %v1224
        %v1241 = vmul.f32 %v1193, %v1225
        %v1242 = vmul.f32 %v1194, %v1226
        %v1243 = vmul.f32 %v1195, %v1227
        %v1244 = vmul.f32 %v1196, %v1228
        %v1245 = vmul.f32 %v1197, %v1229
        %v1246 = vmul.f32 %v1198, %v1230
        %v1247 = vmul.f32 %v1199, %v1231
        %v1248 = vmul.f32 %v1200, %v1232
        %v1249 = vmul.f32 %v1201, %v1233
        %v1250 = vmul.f32 %v1202, %v1234
        %v1251 = vmul.f32 %v1203, %v1235
        %v1252 = vmul.f32 %v1204, %v1236
        %v1253 = vmul.f32 %v1205, %v1237
        %v1254 = vmul.f32 %v1206, %v1238
        %v1255 = vmul.f32 %v1207, %v1239
        %v1256 = vmul.f32 %v1208, %v1240
        %v1257 = vld [vmem:[%s669] sm:$0xff]
        %v1258 = vld [vmem:[%s669 + $0x8] sm:$0xff]
        %v1259 = vld [vmem:[%s669 + $0x10] sm:$0xff]
        %v1260 = vld [vmem:[%s669 + $0x18] sm:$0xff]
        %v1261 = vld [vmem:[%s669 + $0x20] sm:$0xff]
        %v1262 = vld [vmem:[%s669 + $0x28] sm:$0xff]
        %v1263 = vld [vmem:[%s669 + $0x30] sm:$0xff]
        %v1264 = vld [vmem:[%s669 + $0x38] sm:$0xff]
        %v1265 = vld [vmem:[%s669 + $0x40] sm:$0xff]
        %v1266 = vld [vmem:[%s669 + $0x48] sm:$0xff]
        %v1267 = vld [vmem:[%s669 + $0x50] sm:$0xff]
        %v1268 = vld [vmem:[%s669 + $0x58] sm:$0xff]
        %v1269 = vld [vmem:[%s669 + $0x60] sm:$0xff]
        %v1270 = vld [vmem:[%s669 + $0x68] sm:$0xff]
        %v1271 = vld [vmem:[%s669 + $0x70] sm:$0xff]
        %v1272 = vld [vmem:[%s669 + $0x78] sm:$0xff]
        %v1273 = vadd.f32 %v1241, %v1257
        %v1274 = vadd.f32 %v1242, %v1258
        %v1275 = vadd.f32 %v1243, %v1259
        %v1276 = vadd.f32 %v1244, %v1260
        %v1277 = vadd.f32 %v1245, %v1261
        %v1278 = vadd.f32 %v1246, %v1262
        %v1279 = vadd.f32 %v1247, %v1263
        %v1280 = vadd.f32 %v1248, %v1264
        %v1281 = vadd.f32 %v1249, %v1265
        %v1282 = vadd.f32 %v1250, %v1266
        %v1283 = vadd.f32 %v1251, %v1267
        %v1284 = vadd.f32 %v1252, %v1268
        %v1285 = vadd.f32 %v1253, %v1269
        %v1286 = vadd.f32 %v1254, %v1270
        %v1287 = vadd.f32 %v1255, %v1271
        %v1288 = vadd.f32 %v1256, %v1272
        %1289 = vst [vmem:[%s714] sm:$0xff] %v1273
        %1290 = vst [vmem:[%s714 + $0x8] sm:$0xff] %v1274
        %1291 = vst [vmem:[%s714 + $0x10] sm:$0xff] %v1275
        %1292 = vst [vmem:[%s714 + $0x18] sm:$0xff] %v1276
        %1293 = vst [vmem:[%s714 + $0x20] sm:$0xff] %v1277
        %1294 = vst [vmem:[%s714 + $0x28] sm:$0xff] %v1278
        %1295 = vst [vmem:[%s714 + $0x30] sm:$0xff] %v1279
        %1296 = vst [vmem:[%s714 + $0x38] sm:$0xff] %v1280
        %1297 = vst [vmem:[%s714 + $0x40] sm:$0xff] %v1281
        %1298 = vst [vmem:[%s714 + $0x48] sm:$0xff] %v1282
        %1299 = vst [vmem:[%s714 + $0x50] sm:$0xff] %v1283
        %1300 = vst [vmem:[%s714 + $0x58] sm:$0xff] %v1284
        %1301 = vst [vmem:[%s714 + $0x60] sm:$0xff] %v1285
        %1302 = vst [vmem:[%s714 + $0x68] sm:$0xff] %v1286
        %1303 = vst [vmem:[%s714 + $0x70] sm:$0xff] %v1287
        %1304 = vst [vmem:[%s714 + $0x78] sm:$0xff] %v1288
        %s1305 = sand.u32 %s206, 1
        %s1306 = scalar_lea.sflag [#allocation6], %s1305
        %s1307 = sand.u32 %s206, 1
        %s1308 = smul.addr %s1307, 128
        %s1309 = scalar_lea.vmem [#allocation5], %s1308
        // Predicated region
        $region169: #{resblock_forward.1} parent=155 // pred_check
          %p1310 = pneg %p216
        $region170: #{resblock_forward.1} parent=155 // pred_check_branch
          %1312 = sbr.rel (%p1310) target = $region172
        $region171: #{resblock_forward.1} parent=155 // pred_region
          %1314 = vsyncadd %s1306, 0
          %s1315 = smul.addr %s21, 8
          %s1316 = scalar_lea.hbm %s7, %s1315
          %s1317 = sshll.u32 %s1309, 4
          %s1318 = int_to_ptr.vmem [resolvable:$true] %s1317
          %s1319 = sshll.u32 %s1316, 4
          %s1320 = int_to_ptr.hbm [resolvable:$true] %s1319
          %1325 = dma.vmem_to_hbm [thread:$0]  %s1318, 2048, %s1320, %s1306, 128, 256, 8
        $region172: #{resblock_forward.1} parent=155 // pred_fallthru
          _
      $region156: #{resblock_forward.1} parent=5 // pred_fallthru
        _
      %p1326 = scmp.le.s32.totalorder 2, %s16
      // Predicated region
      $region173: #{resblock_forward.1} parent=5 // pred_check
        %p1327 = pneg %p1326
      $region174: #{resblock_forward.1} parent=5 // pred_check_branch
        %1329 = sbr.rel (%p1327) target = $region176
      $region175: #{resblock_forward.1} parent=5 // pred_region
        %s1330 = ssub.s32 %s16, 2
        // Predicated region
        $region177: #{resblock_forward.1} parent=175 // pred_check
          %p1331 = pneg %p222
        $region178: #{resblock_forward.1} parent=175 // pred_check_branch
          %1333 = sbr.rel (%p1331) target = $region180
        $region179: #{resblock_forward.1} parent=175 // pred_region
          %s1334 = sand.u32 %s207, 1
          %s1335 = scalar_lea.sflag [#allocation6], %s1334
          %s1336 = sand.u32 %s207, 1
          %s1337 = smul.addr %s1336, 128
          %s1338 = scalar_lea.vmem [#allocation5], %s1337
          %1340 = dma.done %s1335, 2048
        $region180: #{resblock_forward.1} parent=175 // pred_fallthru
          _
      $region176: #{resblock_forward.1} parent=5 // pred_fallthru
        _
    $region6: #{resblock_forward.1} parent=1 // loop_footer
      %s20 = sadd.s32 1, %s16
    $region7: #{resblock_forward.1} parent=1 // loop_footer_branch
      %15 = sbr.rel target = $region3
    $region8: #{resblock_forward.1} parent=1 // loop_exit
      _
    %1341 = vsyncpa [#allocation6], 1
    %s1342 = scalar_lea.sflag [#allocation6], 1
    %1343 = vsyncpa %s1342, 1

</llo_original>
